<compile_context>
chip_gen: v7x
topology: tpu7x:2x2x1
jax: 0.10.0
libtpu: 0.0.40
codegen_flags: <defaults>
</compile_context>

<pallas_src>
import functools
import math

import jax
import jax.numpy as jnp
from jax.experimental import pallas as pl
from jax.experimental.pallas import tpu as pltpu

EPS = 1e-5
MXU_DTYPE = jnp.bfloat16   # MXU operand dtype; accumulation is always f32.
ACT_DTYPE = jnp.bfloat16   # storage dtype of intermediate activations (z, act).


# --------------------------- compiler params ----------------------------------

def _vmem_limit_bytes():
    # Explicit scoped-VMEM limit: v5e defaults to only 16 MiB of 128 MiB
    # physical, v7x has 64 MiB physical -> use half of physical, capped.
    try:
        cap = pltpu.get_tpu_info().vmem_capacity_bytes
    except Exception:
        cap = 128 * 1024 * 1024
    return int(min(cap // 2, 96 * 1024 * 1024))


def _compiler_params():
    return pltpu.CompilerParams(dimension_semantics=("parallel",),
                                vmem_limit_bytes=_vmem_limit_bytes())


# --------------------------- Pallas kernels ------------------------------------
# All kernels work per image (grid axis = batch):
#   activations: (C, MG) with MG = (Ho+2)*(Wo+2) padded-flat ("P") layout,
#   channels on sublanes, flattened (padded) pixels on lanes.
# A 3x3 tap (ih, iw) of a stride-1 conv is the lane window [d, d+Q) with
# d = ih*GW + iw; the valid conv outputs live at lanes [0, Q) of that raw
# coordinate system and are stored back at lane offset HEAD = GW+1 (the same
# P layout for the next layer), with the halo explicitly zeroed.

def _conv_taps(x, w_ref, taps, q):
    """Sum over the 3x3 taps of (Cout,Cin) x (Cin,Q) MXU matmuls (f32 acc)."""
    acc = None
    for t, d in enumerate(taps):
        part = jnp.dot(w_ref[t], x[:, d:d + q],
                       preferred_element_type=jnp.float32)
        acc = part if acc is None else acc + part
    return acc


def _conv1_s2_shortcut_kernel(xp_ref, w_ref, wsc_ref, s1_ref, b1_ref, b2_ref,
                              imask_ref, omask_ref, z_ref, skip_ref,
                              *, taps, q, head):
    """First layer: bn1-ReLU prologue + 3x3 stride-2 conv1 (+ fused 1x1
    stride-2 shortcut) + bn2(shift)-ReLU epilogue.  Input = 4 parity planes of
    the zero-padded image, each embedded on the output's (GH, GW) grid so each
    tap is a constant lane shift."""
    # Prologue: act = relu(bn1(x)), halo re-zeroed (bn shift breaks zero pad).
    planes = []
    for par in range(4):
        a = jnp.maximum(xp_ref[par] * s1_ref[...] + b1_ref[...], 0.0)
        planes.append((a * imask_ref[par]).astype(MXU_DTYPE))
    # 3x3 stride-2 conv as 9 shifted matmuls (in-kernel im2col).
    acc = None
    for t, (par, d) in enumerate(taps):
        part = jnp.dot(w_ref[t], planes[par][:, d:d + q],
                       preferred_element_type=jnp.float32)
        acc = part if acc is None else acc + part
    # 1x1 stride-2 shortcut = (odd,odd) parity plane, offset 0.
    skip = jnp.dot(wsc_ref[...], planes[3][:, 0:q],
                   preferred_element_type=jnp.float32)
    om = omask_ref[...]
    z = jnp.maximum(acc + b2_ref[...], 0.0) * om      # bn2 scale folded into w
    # Store in the next layer's padded ("P") layout with a zero halo.
    z_ref[...] = jnp.zeros(z_ref.shape, z_ref.dtype)
    skip_ref[...] = jnp.zeros(skip_ref.shape, skip_ref.dtype)
    z_ref[:, head:head + q] = z.astype(z_ref.dtype)
    skip_ref[:, head:head + q] = (skip * om).astype(skip_ref.dtype)


def _conv2_res_bn_kernel(z_ref, w_ref, skip_ref, s1n_ref, b1n_ref, omask_ref,
                         y_ref, act_ref, *, taps, q, head):
    """conv2 + residual; the NEXT layer's bn1-ReLU is fused as an epilogue."""
    acc = _conv_taps(z_ref[...], w_ref, taps, q)
    om = omask_ref[...]
    y = (acc + skip_ref[:, head:head + q]) * om
    a = jnp.maximum(y * s1n_ref[...] + b1n_ref[...], 0.0) * om
    y_ref[...] = jnp.zeros(y_ref.shape, y_ref.dtype)
    act_ref[...] = jnp.zeros(act_ref.shape, act_ref.dtype)
    y_ref[:, head:head + q] = y.astype(y_ref.dtype)
    act_ref[:, head:head + q] = a.astype(act_ref.dtype)


def _conv1_bn_kernel(a_ref, w_ref, b2_ref, omask_ref, z_ref, *, taps, q, head):
    """Equal-in/out layer conv1 with bn2(shift)-ReLU epilogue (scale folded)."""
    acc = _conv_taps(a_ref[...], w_ref, taps, q)
    z = jnp.maximum(acc + b2_ref[...], 0.0) * omask_ref[...]
    z_ref[...] = jnp.zeros(z_ref.shape, z_ref.dtype)
    z_ref[:, head:head + q] = z.astype(z_ref.dtype)


def _conv2_res_kernel(z_ref, w_ref, skip_ref, omask_ref, y_ref,
                      *, taps, q, head):
    """Last layer: conv2 + residual, stored in P layout (extracted outside)."""
    acc = _conv_taps(z_ref[...], w_ref, taps, q)
    y = (acc + skip_ref[:, head:head + q]) * omask_ref[...]
    y_ref[...] = jnp.zeros(y_ref.shape, y_ref.dtype)
    y_ref[:, head:head + q] = y.astype(y_ref.dtype)


# --------------------------- helpers --------------------------------------------

def _bn_fold(bn, c):
    inv = 1.0 / jnp.sqrt(bn["var"] + EPS)
    scale = (bn["gamma"] * inv).reshape(c, 1).astype(jnp.float32)
    shift = (bn["beta"] - bn["mean"] * bn["gamma"] * inv).reshape(c, 1)
    return scale, shift.astype(jnp.float32)


def _wtaps(w_hwio, scale=None):
    # (KH, KW, Cin, Cout) -> (KH*KW, Cout, Cin); optional per-Cout BN scale
    # folded into the weights (review item 3).
    kh, kw, cin, cout = w_hwio.shape
    w = jnp.transpose(w_hwio, (0, 1, 3, 2)).reshape(kh * kw, cout, cin)
    if scale is not None:
        w = w * scale.reshape(1, cout, 1)
    return w.astype(MXU_DTYPE)


def _geom(ho, wo):
    gh, gw = ho + 2, wo + 2
    q = ho * gw - 2
    return dict(
        gh=gh, gw=gw, mg=gh * gw, q=q, head=gw + 1,
        taps1=tuple(ih * gw + iw for ih in range(3) for iw in range(3)),
        omask=((jnp.arange(q) % gw) < wo).astype(jnp.float32).reshape(1, q))


def _parity_planes(x_cnhw, gh, gw):
    """Split the zero-padded input into its 4 (h,w)-parity planes, each
    embedded on the output (GH, GW) grid (exactly 1x data, no 9x slab), plus
    the per-plane 'genuine pixel' mask used to re-zero the halo after the
    in-kernel bn1-ReLU prologue."""
    C, N, H, W = x_cnhw.shape
    xp = jnp.pad(x_cnhw, ((0, 0), (0, 0), (1, 1), (1, 1)))
    planes, masks = [], []
    for p in (0, 1):
        for q in (0, 1):
            plane = xp[:, :, p::2, q::2]
            hh, ww = plane.shape[2], plane.shape[3]
            plane = jnp.pad(plane, ((0, 0), (0, 0), (0, gh - hh), (0, gw - ww)))
            planes.append(plane)
            hpad = p + 2 * jnp.arange(gh)
            wpad = q + 2 * jnp.arange(gw)
            mh = ((hpad >= 1) & (hpad <= H) & (jnp.arange(gh) < hh))
            mw = ((wpad >= 1) & (wpad <= W) & (jnp.arange(gw) < ww))
            masks.append(jnp.outer(mh.astype(jnp.float32),
                                   mw.astype(jnp.float32)).reshape(1, gh * gw))
    xplanes = jnp.stack(planes, axis=0)                       # (4, C, N, gh, gw)
    xplanes = jnp.transpose(xplanes, (2, 0, 1, 3, 4)).reshape(N, 4, C, gh * gw)
    imask = jnp.stack(masks, axis=0)                          # (4, 1, gh*gw)
    return xplanes, imask


def _img_spec(tail):
    """One image per grid step; squeeze the batch dim; last two block dims
    equal the full array extents (satisfies the (8,128) rule)."""
    tail = tuple(tail)
    return pl.BlockSpec((None,) + tail, lambda n: (n,) + (0,) * len(tail))


def _rep_spec(shape):
    """Small replicated operand (weights / BN vectors / masks)."""
    shape = tuple(shape)
    return pl.BlockSpec(shape, lambda n: (0,) * len(shape))


# --------------------------- Pallas wrappers ------------------------------------

def conv1_s2_shortcut_call(xplanes, imask, w1, wsc, s1, b1, b2, g, N, cin, cout):
    taps2 = tuple(((ih % 2) * 2 + (iw % 2), (ih // 2) * g["gw"] + (iw // 2))
                  for ih in range(3) for iw in range(3))
    kernel = functools.partial(_conv1_s2_shortcut_kernel,
                               taps=taps2, q=g["q"], head=g["head"])
    flops = 2 * 10 * cin * cout * g["q"] * N
    bytes_acc = int(xplanes.size * 4 + w1.size * 2 + N * cout * g["mg"] * 6)
    return pl.pallas_call(
        kernel,
        out_shape=(jax.ShapeDtypeStruct((N, cout, g["mg"]), ACT_DTYPE),     # z
                   jax.ShapeDtypeStruct((N, cout, g["mg"]), jnp.float32)),  # skip
        grid=(N,),
        in_specs=[_img_spec((4, cin, g["mg"])),   # parity planes
                  _rep_spec((9, cout, cin)),      # conv1 weights (bn2-scaled)
                  _rep_spec((cout, cin)),         # 1x1 shortcut weights
                  _rep_spec((cin, 1)),            # bn1 scale
                  _rep_spec((cin, 1)),            # bn1 shift
                  _rep_spec((cout, 1)),           # bn2 shift
                  _rep_spec((4, 1, g["mg"])),     # input halo mask
                  _rep_spec((1, g["q"]))],        # output valid mask
        out_specs=(_img_spec((cout, g["mg"])),
                   _img_spec((cout, g["mg"]))),
        compiler_params=_compiler_params(),
        cost_estimate=pl.CostEstimate(flops=flops, transcendentals=0,
                                      bytes_accessed=bytes_acc),
    )(xplanes, w1, wsc, s1, b1, b2, imask, g["omask"])


def conv2_res_bn_call(z, w2, skip, s1n, b1n, g, N, cout):
    kernel = functools.partial(_conv2_res_bn_kernel, taps=g["taps1"],
                               q=g["q"], head=g["head"])
    flops = 2 * 9 * cout * cout * g["q"] * N
    bytes_acc = int(z.size * 2 + skip.size * 4 + w2.size * 2
                    + N * cout * g["mg"] * 6)
    return pl.pallas_call(
        kernel,
        out_shape=(jax.ShapeDtypeStruct((N, cout, g["mg"]), jnp.float32),   # y
                   jax.ShapeDtypeStruct((N, cout, g["mg"]), ACT_DTYPE)),    # act
        grid=(N,),
        in_specs=[_img_spec((cout, g["mg"])),     # z (bf16)
                  _rep_spec((9, cout, cout)),     # conv2 weights
                  _img_spec((cout, g["mg"])),     # skip (f32)
                  _rep_spec((cout, 1)),           # next bn1 scale
                  _rep_spec((cout, 1)),           # next bn1 shift
                  _rep_spec((1, g["q"]))],        # output valid mask
        out_specs=(_img_spec((cout, g["mg"])),
                   _img_spec((cout, g["mg"]))),
        compiler_params=_compiler_params(),
        cost_estimate=pl.CostEstimate(flops=flops, transcendentals=0,
                                      bytes_accessed=bytes_acc),
    )(z, w2, skip, s1n, b1n, g["omask"])


def conv1_bn_call(act, w1, b2, g, N, cout):
    kernel = functools.partial(_conv1_bn_kernel, taps=g["taps1"],
                               q=g["q"], head=g["head"])
    flops = 2 * 9 * cout * cout * g["q"] * N
    bytes_acc = int(act.size * 2 + w1.size * 2 + N * cout * g["mg"] * 2)
    return pl.pallas_call(
        kernel,
        out_shape=jax.ShapeDtypeStruct((N, cout, g["mg"]), ACT_DTYPE),
        grid=(N,),
        in_specs=[_img_spec((cout, g["mg"])),     # act (bf16)
                  _rep_spec((9, cout, cout)),     # conv1 weights (bn2-scaled)
                  _rep_spec((cout, 1)),           # bn2 shift
                  _rep_spec((1, g["q"]))],        # output valid mask
        out_specs=_img_spec((cout, g["mg"])),
        compiler_params=_compiler_params(),
        cost_estimate=pl.CostEstimate(flops=flops, transcendentals=0,
                                      bytes_accessed=bytes_acc),
    )(act, w1, b2, g["omask"])


def conv2_res_call(z, w2, skip, g, N, cout):
    kernel = functools.partial(_conv2_res_kernel, taps=g["taps1"],
                               q=g["q"], head=g["head"])
    flops = 2 * 9 * cout * cout * g["q"] * N
    bytes_acc = int(z.size * 2 + skip.size * 4 + w2.size * 2
                    + N * cout * g["mg"] * 4)
    return pl.pallas_call(
        kernel,
        out_shape=jax.ShapeDtypeStruct((N, cout, g["mg"]), jnp.float32),
        grid=(N,),
        in_specs=[_img_spec((cout, g["mg"])),     # z (bf16)
                  _rep_spec((9, cout, cout)),     # conv2 weights
                  _img_spec((cout, g["mg"])),     # skip (f32)
                  _rep_spec((1, g["q"]))],        # output valid mask
        out_specs=_img_spec((cout, g["mg"])),
        compiler_params=_compiler_params(),
        cost_estimate=pl.CostEstimate(flops=flops, transcendentals=0,
                                      bytes_accessed=bytes_acc),
    )(z, w2, skip, g["omask"])


# --------------------------- Model forward --------------------------------------

def network_block_forward(x_nchw, params):
    N, C_in, H, W = x_nchw.shape
    p0 = params[0]
    assert p0["convShortcut"] is not None and p0["stride"] == 2, \
        "first layer of this NetworkBlock config is stride-2 with a shortcut"
    cout = p0["conv1"].shape[3]
    Ho, Wo = H // p0["stride"], W // p0["stride"]
    g = _geom(Ho, Wo)

    # Layout glue (XLA, ~1x activation-sized): NCHW -> padded parity planes.
    x_c = jnp.transpose(x_nchw, (1, 0, 2, 3))              # (C, N, H, W)
    xplanes, imask = _parity_planes(x_c, g["gh"], g["gw"])

    # Layer 0: bn1-ReLU prologue + conv1(stride2) + 1x1 shortcut + bn2-ReLU.
    s1, b1 = _bn_fold(p0["bn1"], C_in)
    s2, b2 = _bn_fold(p0["bn2"], cout)
    w1 = _wtaps(p0["conv1"], scale=s2)
    wsc = jnp.transpose(p0["convShortcut"][0, 0], (1, 0)).astype(MXU_DTYPE)
    z, skip = conv1_s2_shortcut_call(xplanes, imask, w1, wsc, s1, b1, b2,
                                     g, N, C_in, cout)

    # Layer 0: conv2 + residual (+ fused bn1-ReLU of the next layer if any).
    w2 = _wtaps(p0["conv2"])
    nb = len(params)
    if nb > 1:
        s1n, b1n = _bn_fold(params[1]["bn1"], cout)
        y, act = conv2_res_bn_call(z, w2, skip, s1n, b1n, g, N, cout)
    else:
        y = conv2_res_call(z, w2, skip, g, N, cout)

    # Layers 1..nb-1 (equal in/out, stride 1, identity skip).
    for i in range(1, nb):
        p = params[i]
        assert p["convShortcut"] is None and p["stride"] == 1
        s2i, b2i = _bn_fold(p["bn2"], cout)
        w1i = _wtaps(p["conv1"], scale=s2i)
        z_i = conv1_bn_call(act, w1i, b2i, g, N, cout)
        w2i = _wtaps(p["conv2"])
        if i + 1 < nb:
            s1n, b1n = _bn_fold(params[i + 1]["bn1"], cout)
            y, act = conv2_res_bn_call(z_i, w2i, y, s1n, b1n, g, N, cout)
        else:
            y = conv2_res_call(z_i, w2i, y, g, N, cout)

    # Final extraction: padded-flat -> NCHW (single XLA slice/reshape).
    y4 = y.reshape(N, cout, g["gh"], g["gw"])
    return y4[:, :, 1:1 + Ho, 1:1 + Wo]


# --------------------------- Deterministic params --------------------------------

def init_bn(key, c):
    k0, k1, k2, k3 = jax.random.split(key, 4)
    return dict(
        gamma=jax.random.uniform(k0, (c,), minval=0.5, maxval=1.5),
        beta=0.1 * jax.random.normal(k1, (c,)),
        mean=0.1 * jax.random.normal(k2, (c,)),
        var=jax.random.uniform(k3, (c,), minval=0.5, maxval=1.5),
    )


def init_basic_block(key, in_planes, out_planes, stride):
    ks = jax.random.split(key, 5)
    p = dict(stride=stride)
    p["bn1"] = init_bn(ks[0], in_planes)
    p["conv1"] = (jax.random.normal(ks[1], (3, 3, in_planes, out_planes))
                  * math.sqrt(2.0 / (9 * out_planes)))
    p["bn2"] = init_bn(ks[2], out_planes)
    p["conv2"] = (jax.random.normal(ks[3], (3, 3, out_planes, out_planes))
                  * math.sqrt(2.0 / (9 * out_planes)))
    if in_planes != out_planes:   # matches BasicBlock.equalInOut logic
        p["convShortcut"] = (jax.random.normal(ks[4], (1, 1, in_planes, out_planes))
                             * math.sqrt(2.0 / out_planes))
    else:
        p["convShortcut"] = None
    return p


def init_network_block(key, nb_layers, in_planes, out_planes, stride):
    keys = jax.random.split(key, nb_layers)
    params = []
    for i in range(nb_layers):
        ip = in_planes if i == 0 else out_planes
        st = stride if i == 0 else 1
        params.append(init_basic_block(keys[i], ip, out_planes, st))
    return params


# --------------------------- Pure-JAX reference ----------------------------------

def _conv_ref(x, w, stride):
    pad = (w.shape[0] - 1) // 2
    return jax.lax.conv_general_dilated(
        x, w, window_strides=(stride, stride),
        padding=[(pad, pad), (pad, pad)],
        dimension_numbers=("NHWC", "HWIO", "NHWC"),
        precision=jax.lax.Precision.HIGHEST)


def _bn_relu_ref(x, bn):
    inv = 1.0 / jnp.sqrt(bn["var"] + EPS)
    return jnp.maximum((x - bn["mean"]) * inv * bn["gamma"] + bn["beta"], 0.0)


def network_block_ref(x_nchw, params):
    x = jnp.transpose(x_nchw, (0, 2, 3, 1))
    for p in params:
        act = _bn_relu_ref(x, p["bn1"])
        if p["convShortcut"] is None:
            skip = x
        else:
            skip = _conv_ref(act, p["convShortcut"], p["stride"])
        out = _conv_ref(act, p["conv1"], p["stride"])
        out = _bn_relu_ref(out, p["bn2"])
        out = _conv_ref(out, p["conv2"], 1)
        x = out + skip
    return jnp.transpose(x, (0, 3, 1, 2))


# --------------------------------- Main -------------------------------------------

if __name__ == "__main__":
    key = jax.random.PRNGKey(0)
    k_x, k_p = jax.random.split(key)

    N, C_in, H, W = 2, 4, 16, 16
    C_out, nb_layers, stride = 8, 2, 2

    x = jax.random.normal(k_x, (N, C_in, H, W), dtype=jnp.float32)
    params = init_network_block(k_p, nb_layers, C_in, C_out, stride)

    out = jax.block_until_ready(network_block_forward(x, params))
    ref = jax.block_until_ready(network_block_ref(x, params))

    assert out.shape == (N, C_out, H // stride, W // stride), out.shape
    # bf16 MXU operands / bf16 intermediate activations (f32 accumulation and
    # f32 residual path) vs. f32/HIGHEST reference -> allow bf16 rounding
    # through the 4-conv chain.
    if not jnp.allclose(out, ref, atol=5e-2, rtol=5e-2):
        raise AssertionError(
            "mismatch vs reference: max abs err = "
            f"{float(jnp.max(jnp.abs(out - ref)))}")
    print("KERNEL_OK")
</pallas_src>

<mosaic_0001>
module attributes {stable_mosaic.version = 11 : i64} {
  func.func @_conv1_s2_shortcut_kernel(%arg0: i32, %arg1: memref<1x4x4x100xf32, #tpu.memory_space<vmem>>, %arg2: memref<9x8x4xbf16, #tpu.memory_space<vmem>>, %arg3: memref<8x4xbf16, #tpu.memory_space<vmem>>, %arg4: memref<4x1xf32, #tpu.memory_space<vmem>>, %arg5: memref<4x1xf32, #tpu.memory_space<vmem>>, %arg6: memref<8x1xf32, #tpu.memory_space<vmem>>, %arg7: memref<4x1x100xf32, #tpu.memory_space<vmem>>, %arg8: memref<1x78xf32, #tpu.memory_space<vmem>>, %arg9: memref<1x8x100xbf16, #tpu.memory_space<vmem>>, %arg10: memref<1x8x100xf32, #tpu.memory_space<vmem>>) attributes {dimension_semantics = [#tpu.dimension_semantics<parallel>], iteration_bounds = array<i64: 2>, scalar_prefetch = 0 : i64, scratch_operands = 0 : i64, tpu.core_type = #tpu.core_type<tc>, window_params = [{transform_indices = @transform_0, window_bounds = array<i64: 1, 4, 4, 100>}, {pipeline_mode = #tpu.pipeline_mode<synchronous>, transform_indices = @transform_1, window_bounds = array<i64: 9, 8, 4>}, {pipeline_mode = #tpu.pipeline_mode<synchronous>, transform_indices = @transform_2, window_bounds = array<i64: 8, 4>}, {pipeline_mode = #tpu.pipeline_mode<synchronous>, transform_indices = @transform_3, window_bounds = array<i64: 4, 1>}, {pipeline_mode = #tpu.pipeline_mode<synchronous>, transform_indices = @transform_4, window_bounds = array<i64: 4, 1>}, {pipeline_mode = #tpu.pipeline_mode<synchronous>, transform_indices = @transform_5, window_bounds = array<i64: 8, 1>}, {pipeline_mode = #tpu.pipeline_mode<synchronous>, transform_indices = @transform_6, window_bounds = array<i64: 4, 1, 100>}, {pipeline_mode = #tpu.pipeline_mode<synchronous>, transform_indices = @transform_7, window_bounds = array<i64: 1, 78>}, {transform_indices = @transform_8, window_bounds = array<i64: 1, 8, 100>}, {transform_indices = @transform_9, window_bounds = array<i64: 1, 8, 100>}]} {
    %c0 = arith.constant 0 : index
    %c0_0 = arith.constant 0 : index
    %c0_1 = arith.constant 0 : index
    %c0_2 = arith.constant 0 : index
    %0 = vector.load %arg1[%c0, %c0_0, %c0_1, %c0_2] : memref<1x4x4x100xf32, #tpu.memory_space<vmem>>, vector<1x1x4x100xf32>
    %1 = vector.shape_cast %0 : vector<1x1x4x100xf32> to vector<4x100xf32>
    %c0_3 = arith.constant 0 : index
    %c0_4 = arith.constant 0 : index
    %2 = vector.load %arg4[%c0_3, %c0_4] : memref<4x1xf32, #tpu.memory_space<vmem>>, vector<4x1xf32>
    %3 = vector.broadcast %2 : vector<4x1xf32> to vector<4x100xf32>
    %4 = arith.mulf %1, %3 : vector<4x100xf32>
    %c0_5 = arith.constant 0 : index
    %c0_6 = arith.constant 0 : index
    %5 = vector.load %arg5[%c0_5, %c0_6] : memref<4x1xf32, #tpu.memory_space<vmem>>, vector<4x1xf32>
    %6 = vector.broadcast %5 : vector<4x1xf32> to vector<4x100xf32>
    %7 = arith.addf %4, %6 : vector<4x100xf32>
    %cst = arith.constant 0.000000e+00 : f32
    %8 = vector.broadcast %cst : f32 to vector<4x100xf32>
    %9 = arith.maximumf %7, %8 : vector<4x100xf32>
    %c0_7 = arith.constant 0 : index
    %c0_8 = arith.constant 0 : index
    %c0_9 = arith.constant 0 : index
    %10 = vector.load %arg7[%c0_7, %c0_8, %c0_9] : memref<4x1x100xf32, #tpu.memory_space<vmem>>, vector<1x1x100xf32>
    %11 = vector.shape_cast %10 : vector<1x1x100xf32> to vector<1x100xf32>
    %12 = vector.broadcast %11 : vector<1x100xf32> to vector<4x100xf32>
    %13 = arith.mulf %9, %12 : vector<4x100xf32>
    %14 = arith.truncf %13 : vector<4x100xf32> to vector<4x100xbf16>
    %c0_10 = arith.constant 0 : index
    %c1 = arith.constant 1 : index
    %c0_11 = arith.constant 0 : index
    %c0_12 = arith.constant 0 : index
    %15 = vector.load %arg1[%c0_10, %c1, %c0_11, %c0_12] : memref<1x4x4x100xf32, #tpu.memory_space<vmem>>, vector<1x1x4x100xf32>
    %16 = vector.shape_cast %15 : vector<1x1x4x100xf32> to vector<4x100xf32>
    %c0_13 = arith.constant 0 : index
    %c0_14 = arith.constant 0 : index
    %17 = vector.load %arg4[%c0_13, %c0_14] : memref<4x1xf32, #tpu.memory_space<vmem>>, vector<4x1xf32>
    %18 = vector.broadcast %17 : vector<4x1xf32> to vector<4x100xf32>
    %19 = arith.mulf %16, %18 : vector<4x100xf32>
    %c0_15 = arith.constant 0 : index
    %c0_16 = arith.constant 0 : index
    %20 = vector.load %arg5[%c0_15, %c0_16] : memref<4x1xf32, #tpu.memory_space<vmem>>, vector<4x1xf32>
    %21 = vector.broadcast %20 : vector<4x1xf32> to vector<4x100xf32>
    %22 = arith.addf %19, %21 : vector<4x100xf32>
    %cst_17 = arith.constant 0.000000e+00 : f32
    %23 = vector.broadcast %cst_17 : f32 to vector<4x100xf32>
    %24 = arith.maximumf %22, %23 : vector<4x100xf32>
    %c1_18 = arith.constant 1 : index
    %c0_19 = arith.constant 0 : index
    %c0_20 = arith.constant 0 : index
    %25 = vector.load %arg7[%c1_18, %c0_19, %c0_20] : memref<4x1x100xf32, #tpu.memory_space<vmem>>, vector<1x1x100xf32>
    %26 = vector.shape_cast %25 : vector<1x1x100xf32> to vector<1x100xf32>
    %27 = vector.broadcast %26 : vector<1x100xf32> to vector<4x100xf32>
    %28 = arith.mulf %24, %27 : vector<4x100xf32>
    %29 = arith.truncf %28 : vector<4x100xf32> to vector<4x100xbf16>
    %c0_21 = arith.constant 0 : index
    %c2 = arith.constant 2 : index
    %c0_22 = arith.constant 0 : index
    %c0_23 = arith.constant 0 : index
    %30 = vector.load %arg1[%c0_21, %c2, %c0_22, %c0_23] : memref<1x4x4x100xf32, #tpu.memory_space<vmem>>, vector<1x1x4x100xf32>
    %31 = vector.shape_cast %30 : vector<1x1x4x100xf32> to vector<4x100xf32>
    %c0_24 = arith.constant 0 : index
    %c0_25 = arith.constant 0 : index
    %32 = vector.load %arg4[%c0_24, %c0_25] : memref<4x1xf32, #tpu.memory_space<vmem>>, vector<4x1xf32>
    %33 = vector.broadcast %32 : vector<4x1xf32> to vector<4x100xf32>
    %34 = arith.mulf %31, %33 : vector<4x100xf32>
    %c0_26 = arith.constant 0 : index
    %c0_27 = arith.constant 0 : index
    %35 = vector.load %arg5[%c0_26, %c0_27] : memref<4x1xf32, #tpu.memory_space<vmem>>, vector<4x1xf32>
    %36 = vector.broadcast %35 : vector<4x1xf32> to vector<4x100xf32>
    %37 = arith.addf %34, %36 : vector<4x100xf32>
    %cst_28 = arith.constant 0.000000e+00 : f32
    %38 = vector.broadcast %cst_28 : f32 to vector<4x100xf32>
    %39 = arith.maximumf %37, %38 : vector<4x100xf32>
    %c2_29 = arith.constant 2 : index
    %c0_30 = arith.constant 0 : index
    %c0_31 = arith.constant 0 : index
    %40 = vector.load %arg7[%c2_29, %c0_30, %c0_31] : memref<4x1x100xf32, #tpu.memory_space<vmem>>, vector<1x1x100xf32>
    %41 = vector.shape_cast %40 : vector<1x1x100xf32> to vector<1x100xf32>
    %42 = vector.broadcast %41 : vector<1x100xf32> to vector<4x100xf32>
    %43 = arith.mulf %39, %42 : vector<4x100xf32>
    %44 = arith.truncf %43 : vector<4x100xf32> to vector<4x100xbf16>
    %c0_32 = arith.constant 0 : index
    %c3 = arith.constant 3 : index
    %c0_33 = arith.constant 0 : index
    %c0_34 = arith.constant 0 : index
    %45 = vector.load %arg1[%c0_32, %c3, %c0_33, %c0_34] : memref<1x4x4x100xf32, #tpu.memory_space<vmem>>, vector<1x1x4x100xf32>
    %46 = vector.shape_cast %45 : vector<1x1x4x100xf32> to vector<4x100xf32>
    %c0_35 = arith.constant 0 : index
    %c0_36 = arith.constant 0 : index
    %47 = vector.load %arg4[%c0_35, %c0_36] : memref<4x1xf32, #tpu.memory_space<vmem>>, vector<4x1xf32>
    %48 = vector.broadcast %47 : vector<4x1xf32> to vector<4x100xf32>
    %49 = arith.mulf %46, %48 : vector<4x100xf32>
    %c0_37 = arith.constant 0 : index
    %c0_38 = arith.constant 0 : index
    %50 = vector.load %arg5[%c0_37, %c0_38] : memref<4x1xf32, #tpu.memory_space<vmem>>, vector<4x1xf32>
    %51 = vector.broadcast %50 : vector<4x1xf32> to vector<4x100xf32>
    %52 = arith.addf %49, %51 : vector<4x100xf32>
    %cst_39 = arith.constant 0.000000e+00 : f32
    %53 = vector.broadcast %cst_39 : f32 to vector<4x100xf32>
    %54 = arith.maximumf %52, %53 : vector<4x100xf32>
    %c3_40 = arith.constant 3 : index
    %c0_41 = arith.constant 0 : index
    %c0_42 = arith.constant 0 : index
    %55 = vector.load %arg7[%c3_40, %c0_41, %c0_42] : memref<4x1x100xf32, #tpu.memory_space<vmem>>, vector<1x1x100xf32>
    %56 = vector.shape_cast %55 : vector<1x1x100xf32> to vector<1x100xf32>
    %57 = vector.broadcast %56 : vector<1x100xf32> to vector<4x100xf32>
    %58 = arith.mulf %54, %57 : vector<4x100xf32>
    %59 = arith.truncf %58 : vector<4x100xf32> to vector<4x100xbf16>
    %c0_43 = arith.constant 0 : index
    %c0_44 = arith.constant 0 : index
    %c0_45 = arith.constant 0 : index
    %60 = vector.load %arg2[%c0_43, %c0_44, %c0_45] : memref<9x8x4xbf16, #tpu.memory_space<vmem>>, vector<1x8x4xbf16>
    %61 = vector.shape_cast %60 : vector<1x8x4xbf16> to vector<8x4xbf16>
    %62 = vector.extract_strided_slice %14 {offsets = [0, 0], sizes = [4, 78], strides = [1, 1]} : vector<4x100xbf16> to vector<4x78xbf16>
    %cst_46 = arith.constant dense<0.000000e+00> : vector<8x78xf32>
    %63 = tpu.matmul %61, %62, %cst_46 {dimension_numbers = #tpu.dot_dimension_numbers<[1], [0], [0], [1], [0, 0, 1, 1], [], []>} : vector<8x4xbf16>, vector<4x78xbf16>, vector<8x78xf32> -> vector<8x78xf32>
    %c1_47 = arith.constant 1 : index
    %c0_48 = arith.constant 0 : index
    %c0_49 = arith.constant 0 : index
    %64 = vector.load %arg2[%c1_47, %c0_48, %c0_49] : memref<9x8x4xbf16, #tpu.memory_space<vmem>>, vector<1x8x4xbf16>
    %65 = vector.shape_cast %64 : vector<1x8x4xbf16> to vector<8x4xbf16>
    %66 = vector.extract_strided_slice %29 {offsets = [0, 0], sizes = [4, 78], strides = [1, 1]} : vector<4x100xbf16> to vector<4x78xbf16>
    %cst_50 = arith.constant dense<0.000000e+00> : vector<8x78xf32>
    %67 = tpu.matmul %65, %66, %cst_50 {dimension_numbers = #tpu.dot_dimension_numbers<[1], [0], [0], [1], [0, 0, 1, 1], [], []>} : vector<8x4xbf16>, vector<4x78xbf16>, vector<8x78xf32> -> vector<8x78xf32>
    %68 = arith.addf %63, %67 : vector<8x78xf32>
    %c2_51 = arith.constant 2 : index
    %c0_52 = arith.constant 0 : index
    %c0_53 = arith.constant 0 : index
    %69 = vector.load %arg2[%c2_51, %c0_52, %c0_53] : memref<9x8x4xbf16, #tpu.memory_space<vmem>>, vector<1x8x4xbf16>
    %70 = vector.shape_cast %69 : vector<1x8x4xbf16> to vector<8x4xbf16>
    %71 = vector.extract_strided_slice %14 {offsets = [0, 1], sizes = [4, 78], strides = [1, 1]} : vector<4x100xbf16> to vector<4x78xbf16>
    %cst_54 = arith.constant dense<0.000000e+00> : vector<8x78xf32>
    %72 = tpu.matmul %70, %71, %cst_54 {dimension_numbers = #tpu.dot_dimension_numbers<[1], [0], [0], [1], [0, 0, 1, 1], [], []>} : vector<8x4xbf16>, vector<4x78xbf16>, vector<8x78xf32> -> vector<8x78xf32>
    %73 = arith.addf %68, %72 : vector<8x78xf32>
    %c3_55 = arith.constant 3 : index
    %c0_56 = arith.constant 0 : index
    %c0_57 = arith.constant 0 : index
    %74 = vector.load %arg2[%c3_55, %c0_56, %c0_57] : memref<9x8x4xbf16, #tpu.memory_space<vmem>>, vector<1x8x4xbf16>
    %75 = vector.shape_cast %74 : vector<1x8x4xbf16> to vector<8x4xbf16>
    %76 = vector.extract_strided_slice %44 {offsets = [0, 0], sizes = [4, 78], strides = [1, 1]} : vector<4x100xbf16> to vector<4x78xbf16>
    %cst_58 = arith.constant dense<0.000000e+00> : vector<8x78xf32>
    %77 = tpu.matmul %75, %76, %cst_58 {dimension_numbers = #tpu.dot_dimension_numbers<[1], [0], [0], [1], [0, 0, 1, 1], [], []>} : vector<8x4xbf16>, vector<4x78xbf16>, vector<8x78xf32> -> vector<8x78xf32>
    %78 = arith.addf %73, %77 : vector<8x78xf32>
    %c4 = arith.constant 4 : index
    %c0_59 = arith.constant 0 : index
    %c0_60 = arith.constant 0 : index
    %79 = vector.load %arg2[%c4, %c0_59, %c0_60] : memref<9x8x4xbf16, #tpu.memory_space<vmem>>, vector<1x8x4xbf16>
    %80 = vector.shape_cast %79 : vector<1x8x4xbf16> to vector<8x4xbf16>
    %81 = vector.extract_strided_slice %59 {offsets = [0, 0], sizes = [4, 78], strides = [1, 1]} : vector<4x100xbf16> to vector<4x78xbf16>
    %cst_61 = arith.constant dense<0.000000e+00> : vector<8x78xf32>
    %82 = tpu.matmul %80, %81, %cst_61 {dimension_numbers = #tpu.dot_dimension_numbers<[1], [0], [0], [1], [0, 0, 1, 1], [], []>} : vector<8x4xbf16>, vector<4x78xbf16>, vector<8x78xf32> -> vector<8x78xf32>
    %83 = arith.addf %78, %82 : vector<8x78xf32>
    %c5 = arith.constant 5 : index
    %c0_62 = arith.constant 0 : index
    %c0_63 = arith.constant 0 : index
    %84 = vector.load %arg2[%c5, %c0_62, %c0_63] : memref<9x8x4xbf16, #tpu.memory_space<vmem>>, vector<1x8x4xbf16>
    %85 = vector.shape_cast %84 : vector<1x8x4xbf16> to vector<8x4xbf16>
    %86 = vector.extract_strided_slice %44 {offsets = [0, 1], sizes = [4, 78], strides = [1, 1]} : vector<4x100xbf16> to vector<4x78xbf16>
    %cst_64 = arith.constant dense<0.000000e+00> : vector<8x78xf32>
    %87 = tpu.matmul %85, %86, %cst_64 {dimension_numbers = #tpu.dot_dimension_numbers<[1], [0], [0], [1], [0, 0, 1, 1], [], []>} : vector<8x4xbf16>, vector<4x78xbf16>, vector<8x78xf32> -> vector<8x78xf32>
    %88 = arith.addf %83, %87 : vector<8x78xf32>
    %c6 = arith.constant 6 : index
    %c0_65 = arith.constant 0 : index
    %c0_66 = arith.constant 0 : index
    %89 = vector.load %arg2[%c6, %c0_65, %c0_66] : memref<9x8x4xbf16, #tpu.memory_space<vmem>>, vector<1x8x4xbf16>
    %90 = vector.shape_cast %89 : vector<1x8x4xbf16> to vector<8x4xbf16>
    %91 = vector.extract_strided_slice %14 {offsets = [0, 10], sizes = [4, 78], strides = [1, 1]} : vector<4x100xbf16> to vector<4x78xbf16>
    %cst_67 = arith.constant dense<0.000000e+00> : vector<8x78xf32>
    %92 = tpu.matmul %90, %91, %cst_67 {dimension_numbers = #tpu.dot_dimension_numbers<[1], [0], [0], [1], [0, 0, 1, 1], [], []>} : vector<8x4xbf16>, vector<4x78xbf16>, vector<8x78xf32> -> vector<8x78xf32>
    %93 = arith.addf %88, %92 : vector<8x78xf32>
    %c7 = arith.constant 7 : index
    %c0_68 = arith.constant 0 : index
    %c0_69 = arith.constant 0 : index
    %94 = vector.load %arg2[%c7, %c0_68, %c0_69] : memref<9x8x4xbf16, #tpu.memory_space<vmem>>, vector<1x8x4xbf16>
    %95 = vector.shape_cast %94 : vector<1x8x4xbf16> to vector<8x4xbf16>
    %96 = vector.extract_strided_slice %29 {offsets = [0, 10], sizes = [4, 78], strides = [1, 1]} : vector<4x100xbf16> to vector<4x78xbf16>
    %cst_70 = arith.constant dense<0.000000e+00> : vector<8x78xf32>
    %97 = tpu.matmul %95, %96, %cst_70 {dimension_numbers = #tpu.dot_dimension_numbers<[1], [0], [0], [1], [0, 0, 1, 1], [], []>} : vector<8x4xbf16>, vector<4x78xbf16>, vector<8x78xf32> -> vector<8x78xf32>
    %98 = arith.addf %93, %97 : vector<8x78xf32>
    %c8 = arith.constant 8 : index
    %c0_71 = arith.constant 0 : index
    %c0_72 = arith.constant 0 : index
    %99 = vector.load %arg2[%c8, %c0_71, %c0_72] : memref<9x8x4xbf16, #tpu.memory_space<vmem>>, vector<1x8x4xbf16>
    %100 = vector.shape_cast %99 : vector<1x8x4xbf16> to vector<8x4xbf16>
    %101 = vector.extract_strided_slice %14 {offsets = [0, 11], sizes = [4, 78], strides = [1, 1]} : vector<4x100xbf16> to vector<4x78xbf16>
    %cst_73 = arith.constant dense<0.000000e+00> : vector<8x78xf32>
    %102 = tpu.matmul %100, %101, %cst_73 {dimension_numbers = #tpu.dot_dimension_numbers<[1], [0], [0], [1], [0, 0, 1, 1], [], []>} : vector<8x4xbf16>, vector<4x78xbf16>, vector<8x78xf32> -> vector<8x78xf32>
    %103 = arith.addf %98, %102 : vector<8x78xf32>
    %c0_74 = arith.constant 0 : index
    %c0_75 = arith.constant 0 : index
    %104 = vector.load %arg3[%c0_74, %c0_75] : memref<8x4xbf16, #tpu.memory_space<vmem>>, vector<8x4xbf16>
    %105 = vector.extract_strided_slice %59 {offsets = [0, 0], sizes = [4, 78], strides = [1, 1]} : vector<4x100xbf16> to vector<4x78xbf16>
    %cst_76 = arith.constant dense<0.000000e+00> : vector<8x78xf32>
    %106 = tpu.matmul %104, %105, %cst_76 {dimension_numbers = #tpu.dot_dimension_numbers<[1], [0], [0], [1], [0, 0, 1, 1], [], []>} : vector<8x4xbf16>, vector<4x78xbf16>, vector<8x78xf32> -> vector<8x78xf32>
    %c0_77 = arith.constant 0 : index
    %c0_78 = arith.constant 0 : index
    %107 = vector.load %arg8[%c0_77, %c0_78] : memref<1x78xf32, #tpu.memory_space<vmem>>, vector<1x78xf32>
    %c0_79 = arith.constant 0 : index
    %c0_80 = arith.constant 0 : index
    %108 = vector.load %arg6[%c0_79, %c0_80] : memref<8x1xf32, #tpu.memory_space<vmem>>, vector<8x1xf32>
    %109 = vector.broadcast %108 : vector<8x1xf32> to vector<8x78xf32>
    %110 = arith.addf %103, %109 : vector<8x78xf32>
    %cst_81 = arith.constant 0.000000e+00 : f32
    %111 = vector.broadcast %cst_81 : f32 to vector<8x78xf32>
    %112 = arith.maximumf %110, %111 : vector<8x78xf32>
    %113 = vector.broadcast %107 : vector<1x78xf32> to vector<8x78xf32>
    %114 = arith.mulf %112, %113 : vector<8x78xf32>
    %cst_82 = arith.constant 0.000000e+00 : bf16
    %115 = vector.broadcast %cst_82 : bf16 to vector<8x100xbf16>
    %c0_83 = arith.constant 0 : index
    %c0_84 = arith.constant 0 : index
    %c0_85 = arith.constant 0 : index
    %116 = vector.load %arg9[%c0_83, %c0_84, %c0_85] : memref<1x8x100xbf16, #tpu.memory_space<vmem>>, vector<1x8x100xbf16>
    %117 = vector.shape_cast %116 : vector<1x8x100xbf16> to vector<8x100xbf16>
    %118 = vector.shape_cast %115 : vector<8x100xbf16> to vector<1x8x100xbf16>
    tpu.vector_store %arg9[%c0_83, %c0_84, %c0_85], %118 {strides = array<i32>} : memref<1x8x100xbf16, #tpu.memory_space<vmem>>, vector<1x8x100xbf16>,
    %cst_86 = arith.constant 0.000000e+00 : f32
    %119 = vector.broadcast %cst_86 : f32 to vector<8x100xf32>
    %c0_87 = arith.constant 0 : index
    %c0_88 = arith.constant 0 : index
    %c0_89 = arith.constant 0 : index
    %120 = vector.load %arg10[%c0_87, %c0_88, %c0_89] : memref<1x8x100xf32, #tpu.memory_space<vmem>>, vector<1x8x100xf32>
    %121 = vector.shape_cast %120 : vector<1x8x100xf32> to vector<8x100xf32>
    %122 = vector.shape_cast %119 : vector<8x100xf32> to vector<1x8x100xf32>
    tpu.vector_store %arg10[%c0_87, %c0_88, %c0_89], %122 {strides = array<i32>} : memref<1x8x100xf32, #tpu.memory_space<vmem>>, vector<1x8x100xf32>,
    %123 = arith.truncf %114 : vector<8x78xf32> to vector<8x78xbf16>
    %c0_90 = arith.constant 0 : index
    %c0_91 = arith.constant 0 : index
    %c11 = arith.constant 11 : index
    %124 = vector.load %arg9[%c0_90, %c0_91, %c11] : memref<1x8x100xbf16, #tpu.memory_space<vmem>>, vector<1x8x78xbf16>
    %125 = vector.shape_cast %124 : vector<1x8x78xbf16> to vector<8x78xbf16>
    %126 = vector.shape_cast %123 : vector<8x78xbf16> to vector<1x8x78xbf16>
    tpu.vector_store %arg9[%c0_90, %c0_91, %c11], %126 {strides = array<i32>} : memref<1x8x100xbf16, #tpu.memory_space<vmem>>, vector<1x8x78xbf16>,
    %127 = vector.broadcast %107 : vector<1x78xf32> to vector<8x78xf32>
    %128 = arith.mulf %106, %127 : vector<8x78xf32>
    %c0_92 = arith.constant 0 : index
    %c0_93 = arith.constant 0 : index
    %c11_94 = arith.constant 11 : index
    %129 = vector.load %arg10[%c0_92, %c0_93, %c11_94] : memref<1x8x100xf32, #tpu.memory_space<vmem>>, vector<1x8x78xf32>
    %130 = vector.shape_cast %129 : vector<1x8x78xf32> to vector<8x78xf32>
    %131 = vector.shape_cast %128 : vector<8x78xf32> to vector<1x8x78xf32>
    tpu.vector_store %arg10[%c0_92, %c0_93, %c11_94], %131 {strides = array<i32>} : memref<1x8x100xf32, #tpu.memory_space<vmem>>, vector<1x8x78xf32>,
    return
  }
  func.func @transform_0(%arg0: i32) -> (i32, i32, i32, i32) {
    %c0_i32 = arith.constant 0 : i32
    %c0_i32_0 = arith.constant 0 : i32
    %c0_i32_1 = arith.constant 0 : i32
    %c0_i32_2 = arith.constant 0 : i32
    return %arg0, %c0_i32, %c0_i32_0, %c0_i32_1 : i32, i32, i32, i32
  }
  func.func @transform_1(%arg0: i32) -> (i32, i32, i32) {
    %c0_i32 = arith.constant 0 : i32
    %c0_i32_0 = arith.constant 0 : i32
    %c0_i32_1 = arith.constant 0 : i32
    %c0_i32_2 = arith.constant 0 : i32
    return %c0_i32, %c0_i32_0, %c0_i32_1 : i32, i32, i32
  }
  func.func @transform_2(%arg0: i32) -> (i32, i32) {
    %c0_i32 = arith.constant 0 : i32
    %c0_i32_0 = arith.constant 0 : i32
    %c0_i32_1 = arith.constant 0 : i32
    return %c0_i32, %c0_i32_0 : i32, i32
  }
  func.func @transform_3(%arg0: i32) -> (i32, i32) {
    %c0_i32 = arith.constant 0 : i32
    %c0_i32_0 = arith.constant 0 : i32
    %c0_i32_1 = arith.constant 0 : i32
    return %c0_i32, %c0_i32_0 : i32, i32
  }
  func.func @transform_4(%arg0: i32) -> (i32, i32) {
    %c0_i32 = arith.constant 0 : i32
    %c0_i32_0 = arith.constant 0 : i32
    %c0_i32_1 = arith.constant 0 : i32
    return %c0_i32, %c0_i32_0 : i32, i32
  }
  func.func @transform_5(%arg0: i32) -> (i32, i32) {
    %c0_i32 = arith.constant 0 : i32
    %c0_i32_0 = arith.constant 0 : i32
    %c0_i32_1 = arith.constant 0 : i32
    return %c0_i32, %c0_i32_0 : i32, i32
  }
  func.func @transform_6(%arg0: i32) -> (i32, i32, i32) {
    %c0_i32 = arith.constant 0 : i32
    %c0_i32_0 = arith.constant 0 : i32
    %c0_i32_1 = arith.constant 0 : i32
    %c0_i32_2 = arith.constant 0 : i32
    return %c0_i32, %c0_i32_0, %c0_i32_1 : i32, i32, i32
  }
  func.func @transform_7(%arg0: i32) -> (i32, i32) {
    %c0_i32 = arith.constant 0 : i32
    %c0_i32_0 = arith.constant 0 : i32
    %c0_i32_1 = arith.constant 0 : i32
    return %c0_i32, %c0_i32_0 : i32, i32
  }
  func.func @transform_8(%arg0: i32) -> (i32, i32, i32) {
    %c0_i32 = arith.constant 0 : i32
    %c0_i32_0 = arith.constant 0 : i32
    %c0_i32_1 = arith.constant 0 : i32
    return %arg0, %c0_i32, %c0_i32_0 : i32, i32, i32
  }
  func.func @transform_9(%arg0: i32) -> (i32, i32, i32) {
    %c0_i32 = arith.constant 0 : i32
    %c0_i32_0 = arith.constant 0 : i32
    %c0_i32_1 = arith.constant 0 : i32
    return %arg0, %c0_i32, %c0_i32_0 : i32, i32, i32
  }
}

</mosaic_0001>

<llo_original>
// kernel: tpu_custom_call.1
$region0: #{tpu_custom_call.1}
  #allocation0 [shape = 'u32[]', space=smem, size = 0x4, offset = 0x4, fixed_abs, tag = 'smem constant byte address 0x4 - core index']
  #allocation1 [shape = 'u32[144,128]{1,0:T(1,128)}', space=vmem, size = 0x12000, scoped, tag = 'internal scratch']
  %s0 = inlined_call_operand.hbm [shape: f32[2,4,4,100], index: 0, kind: input, shape index: {}]
  %s1 = inlined_call_operand.hbm [shape: bf16[9,8,4], index: 1, kind: input, shape index: {}]
  %s2 = inlined_call_operand.hbm [shape: bf16[8,4], index: 2, kind: input, shape index: {}]
  %s3 = inlined_call_operand.hbm [shape: f32[4,1], index: 3, kind: input, shape index: {}]
  %s4 = inlined_call_operand.hbm [shape: f32[4,1], index: 4, kind: input, shape index: {}]
  %s5 = inlined_call_operand.hbm [shape: f32[8,1], index: 5, kind: input, shape index: {}]
  %s6 = inlined_call_operand.hbm [shape: f32[4,1,100], index: 6, kind: input, shape index: {}]
  %s7 = inlined_call_operand.hbm [shape: f32[1,78], index: 7, kind: input, shape index: {}]
  %s8 = inlined_call_operand.hbm [shape: bf16[2,8,100], index: 8, kind: output, shape index: {0}]
  %s9 = inlined_call_operand.hbm [shape: f32[2,8,100], index: 9, kind: output, shape index: {1}]
  %10 = xla_tuple %s8, %s9
  %s11 = sld [smem:[#allocation0]]
  $region105: #{tpu_custom_call.1} parent=0
    _
  %s13 = ssub.s32 1, %s11
  %s14 = scalar_select 0, %s13, %s11
  $region1: #{tpu_custom_call.1} parent=0
    #allocation2 [shape = 'u8[16384]{0}', space=vmem, size = 0x4000, scoped, tag = 'input window, operand 0']
    #allocation3 [shape = 's32[2]{0}', space=sflag, size = 0x8, scoped, tag = 'scoped memory for tpu_custom_call.1']
    #allocation4 [shape = 's32[2]{0}', space=sflag, size = 0x8, scoped, tag = 'scoped memory for tpu_custom_call.1']
    #allocation5 [shape = 'u8[18432]{0}', space=vmem, size = 0x4800, scoped, tag = 'input window, operand 1, single buffered']
    #allocation6 [shape = 's32[1]{0}', space=sflag, size = 0x4, scoped, tag = 'scoped memory for tpu_custom_call.1']
    #allocation7 [shape = 'u8[2048]{0}', space=vmem, size = 0x800, scoped, tag = 'input window, operand 2, single buffered']
    #allocation8 [shape = 'u8[2048]{0}', space=vmem, size = 0x800, scoped, tag = 'input window, operand 3, single buffered']
    #allocation9 [shape = 's32[1]{0}', space=sflag, size = 0x4, scoped, tag = 'scoped memory for tpu_custom_call.1']
    #allocation10 [shape = 'u8[2048]{0}', space=vmem, size = 0x800, scoped, tag = 'input window, operand 4, single buffered']
    #allocation11 [shape = 'u8[4096]{0}', space=vmem, size = 0x1000, scoped, tag = 'input window, operand 5, single buffered']
    #allocation12 [shape = 's32[1]{0}', space=sflag, size = 0x4, scoped, tag = 'scoped memory for tpu_custom_call.1']
    #allocation13 [shape = 'u8[2048]{0}', space=vmem, size = 0x800, scoped, tag = 'input window, operand 6, single buffered']
    #allocation14 [shape = 'u8[512]{0}', space=vmem, size = 0x400, scoped, tag = 'input window, operand 7, single buffered']
    #allocation15 [shape = 's32[1]{0}', space=sflag, size = 0x4, scoped, tag = 'scoped memory for tpu_custom_call.1']
    #allocation16 [shape = 'u8[4096]{0}', space=vmem, size = 0x1000, scoped, tag = 'output window, operand 0']
    #allocation17 [shape = 'u8[8192]{0}', space=vmem, size = 0x2000, scoped, tag = 'output window, operand 1']
    #allocation18 [shape = 's32[2]{0}', space=sflag, size = 0x8, scoped, tag = 'scoped memory for tpu_custom_call.1']
    %15 = vsyncpa [#allocation3], 0
    %s16 = scalar_lea.sflag [#allocation3], 1
    %17 = vsyncpa %s16, 0
    %18 = vsyncpa [#allocation6], 0
    %19 = vsyncpa [#allocation9], 0
    %20 = vsyncpa [#allocation12], 0
    %21 = vsyncpa [#allocation15], 0
    %22 = vsyncpa [#allocation4], 0
    %s23 = scalar_lea.sflag [#allocation4], 1
    %24 = vsyncpa %s23, 0
    %25 = vsyncpa [#allocation18], 0
    %s26 = scalar_lea.sflag [#allocation18], 1
    %27 = vsyncpa %s26, 0
    loop: start=0, step=1, limit=4
    $region2: #{tpu_custom_call.1} parent=1 // loop_pre_header
      _
    $region3: #{tpu_custom_call.1} parent=1 // loop_header
      %s29 = sphi 0, %s33
      %p30 = scmp.ge.s32.totalorder %s29, 4
      %s39 = sphi 0, %s41
      %s42 = sphi 0, %s39
      %s43 = sphi 0, %s42
      %s59 = sphi 0, %s43
      %s63 = sphi 0, %s63
      %s65 = sphi 0, %s63
      %s66 = sphi 0, %s65
      %s80 = sphi 0, %s66
      %s84 = sphi 0, %s84
      %s86 = sphi 0, %s84
      %s87 = sphi 0, %s86
      %s101 = sphi 0, %s87
      %s105 = sphi 0, %s105
      %s107 = sphi 0, %s105
      %s108 = sphi 0, %s107
      %s122 = sphi 0, %s108
      %s126 = sphi 0, %s126
      %s128 = sphi 0, %s126
      %s129 = sphi 0, %s128
      %s143 = sphi 0, %s129
      %s147 = sphi 0, %s147
      %s149 = sphi 0, %s147
      %s150 = sphi 0, %s149
      %s164 = sphi 0, %s150
      %s168 = sphi 0, %s168
      %s170 = sphi 0, %s168
      %s171 = sphi 0, %s170
      %s185 = sphi 0, %s171
      %s189 = sphi 0, %s189
      %s191 = sphi 0, %s189
      %s192 = sphi 0, %s191
      %s206 = sphi 0, %s192
      %s212 = sphi 0, %s214
      %s215 = sphi 0, %s212
      %s216 = sphi 0, %s215
      %s232 = sphi 0, %s216
      %s238 = sphi 0, %s240
      %s241 = sphi 0, %s238
      %s242 = sphi 0, %s241
      %s258 = sphi 0, %s242
    $region4: #{tpu_custom_call.1} parent=1 // loop_header_branch
      %32 = sbr.rel (%p30) target = $region8
    $region5: #{tpu_custom_call.1} parent=1 // loop_body
      %s34 = ssub.s32 %s29, 1
      %s35 = ssub.s32 %s29, 2
      %s36 = sadd.s32 %s29, 1
      %s37 = ssub.s32 %s29, %s36
      %p38 = scmp.eq.s32.totalorder %s37, 0
      %s40 = sadd.s32 %s39, 1
      %s41 = scalar_select %p38, %s39, %s40
      %p44 = pneg %p38
      %p45 = scmp.eq.s32.totalorder %s29, 1
      %p46 = por %p44, %p45
      %p47 = scmp.ne.s32.totalorder %s39, %s42
      %p48 = scmp.eq.s32.totalorder %s29, 0
      %p49 = por %p47, %p48
      %p50 = scmp.ne.s32.totalorder %s39, %s42
      %p51 = scmp.eq.s32.totalorder %s34, 1
      %p52 = por %p50, %p51
      %p53 = scmp.ne.s32.totalorder %s42, %s43
      %p54 = scmp.eq.s32.totalorder %s34, 0
      %p55 = por %p53, %p54
      %p56 = scmp.ne.s32.totalorder %s42, %s43
      %p57 = scmp.eq.s32.totalorder %s35, 1
      %p58 = por %p56, %p57
      %p60 = scmp.ne.s32.totalorder %s43, %s59
      %p61 = scmp.eq.s32.totalorder %s35, 0
      %p62 = por %p60, %p61
      %s64 = sadd.s32 %s63, 1
      %p67 = scmp.eq.s32.totalorder %s29, 1
      %p68 = scmp.ne.s32.totalorder %s63, %s65
      %p69 = scmp.eq.s32.totalorder %s29, 0
      %p70 = por %p68, %p69
      %p71 = scmp.ne.s32.totalorder %s63, %s65
      %p72 = scmp.eq.s32.totalorder %s34, 1
      %p73 = por %p71, %p72
      %p74 = scmp.ne.s32.totalorder %s65, %s66
      %p75 = scmp.eq.s32.totalorder %s34, 0
      %p76 = por %p74, %p75
      %p77 = scmp.ne.s32.totalorder %s65, %s66
      %p78 = scmp.eq.s32.totalorder %s35, 1
      %p79 = por %p77, %p78
      %p81 = scmp.ne.s32.totalorder %s66, %s80
      %p82 = scmp.eq.s32.totalorder %s35, 0
      %p83 = por %p81, %p82
      %s85 = sadd.s32 %s84, 1
      %p88 = scmp.eq.s32.totalorder %s29, 1
      %p89 = scmp.ne.s32.totalorder %s84, %s86
      %p90 = scmp.eq.s32.totalorder %s29, 0
      %p91 = por %p89, %p90
      %p92 = scmp.ne.s32.totalorder %s84, %s86
      %p93 = scmp.eq.s32.totalorder %s34, 1
      %p94 = por %p92, %p93
      %p95 = scmp.ne.s32.totalorder %s86, %s87
      %p96 = scmp.eq.s32.totalorder %s34, 0
      %p97 = por %p95, %p96
      %p98 = scmp.ne.s32.totalorder %s86, %s87
      %p99 = scmp.eq.s32.totalorder %s35, 1
      %p100 = por %p98, %p99
      %p102 = scmp.ne.s32.totalorder %s87, %s101
      %p103 = scmp.eq.s32.totalorder %s35, 0
      %p104 = por %p102, %p103
      %s106 = sadd.s32 %s105, 1
      %p109 = scmp.eq.s32.totalorder %s29, 1
      %p110 = scmp.ne.s32.totalorder %s105, %s107
      %p111 = scmp.eq.s32.totalorder %s29, 0
      %p112 = por %p110, %p111
      %p113 = scmp.ne.s32.totalorder %s105, %s107
      %p114 = scmp.eq.s32.totalorder %s34, 1
      %p115 = por %p113, %p114
      %p116 = scmp.ne.s32.totalorder %s107, %s108
      %p117 = scmp.eq.s32.totalorder %s34, 0
      %p118 = por %p116, %p117
      %p119 = scmp.ne.s32.totalorder %s107, %s108
      %p120 = scmp.eq.s32.totalorder %s35, 1
      %p121 = por %p119, %p120
      %p123 = scmp.ne.s32.totalorder %s108, %s122
      %p124 = scmp.eq.s32.totalorder %s35, 0
      %p125 = por %p123, %p124
      %s127 = sadd.s32 %s126, 1
      %p130 = scmp.eq.s32.totalorder %s29, 1
      %p131 = scmp.ne.s32.totalorder %s126, %s128
      %p132 = scmp.eq.s32.totalorder %s29, 0
      %p133 = por %p131, %p132
      %p134 = scmp.ne.s32.totalorder %s126, %s128
      %p135 = scmp.eq.s32.totalorder %s34, 1
      %p136 = por %p134, %p135
      %p137 = scmp.ne.s32.totalorder %s128, %s129
      %p138 = scmp.eq.s32.totalorder %s34, 0
      %p139 = por %p137, %p138
      %p140 = scmp.ne.s32.totalorder %s128, %s129
      %p141 = scmp.eq.s32.totalorder %s35, 1
      %p142 = por %p140, %p141
      %p144 = scmp.ne.s32.totalorder %s129, %s143
      %p145 = scmp.eq.s32.totalorder %s35, 0
      %p146 = por %p144, %p145
      %s148 = sadd.s32 %s147, 1
      %p151 = scmp.eq.s32.totalorder %s29, 1
      %p152 = scmp.ne.s32.totalorder %s147, %s149
      %p153 = scmp.eq.s32.totalorder %s29, 0
      %p154 = por %p152, %p153
      %p155 = scmp.ne.s32.totalorder %s147, %s149
      %p156 = scmp.eq.s32.totalorder %s34, 1
      %p157 = por %p155, %p156
      %p158 = scmp.ne.s32.totalorder %s149, %s150
      %p159 = scmp.eq.s32.totalorder %s34, 0
      %p160 = por %p158, %p159
      %p161 = scmp.ne.s32.totalorder %s149, %s150
      %p162 = scmp.eq.s32.totalorder %s35, 1
      %p163 = por %p161, %p162
      %p165 = scmp.ne.s32.totalorder %s150, %s164
      %p166 = scmp.eq.s32.totalorder %s35, 0
      %p167 = por %p165, %p166
      %s169 = sadd.s32 %s168, 1
      %p172 = scmp.eq.s32.totalorder %s29, 1
      %p173 = scmp.ne.s32.totalorder %s168, %s170
      %p174 = scmp.eq.s32.totalorder %s29, 0
      %p175 = por %p173, %p174
      %p176 = scmp.ne.s32.totalorder %s168, %s170
      %p177 = scmp.eq.s32.totalorder %s34, 1
      %p178 = por %p176, %p177
      %p179 = scmp.ne.s32.totalorder %s170, %s171
      %p180 = scmp.eq.s32.totalorder %s34, 0
      %p181 = por %p179, %p180
      %p182 = scmp.ne.s32.totalorder %s170, %s171
      %p183 = scmp.eq.s32.totalorder %s35, 1
      %p184 = por %p182, %p183
      %p186 = scmp.ne.s32.totalorder %s171, %s185
      %p187 = scmp.eq.s32.totalorder %s35, 0
      %p188 = por %p186, %p187
      %s190 = sadd.s32 %s189, 1
      %p193 = scmp.eq.s32.totalorder %s29, 1
      %p194 = scmp.ne.s32.totalorder %s189, %s191
      %p195 = scmp.eq.s32.totalorder %s29, 0
      %p196 = por %p194, %p195
      %p197 = scmp.ne.s32.totalorder %s189, %s191
      %p198 = scmp.eq.s32.totalorder %s34, 1
      %p199 = por %p197, %p198
      %p200 = scmp.ne.s32.totalorder %s191, %s192
      %p201 = scmp.eq.s32.totalorder %s34, 0
      %p202 = por %p200, %p201
      %p203 = scmp.ne.s32.totalorder %s191, %s192
      %p204 = scmp.eq.s32.totalorder %s35, 1
      %p205 = por %p203, %p204
      %p207 = scmp.ne.s32.totalorder %s192, %s206
      %p208 = scmp.eq.s32.totalorder %s35, 0
      %p209 = por %p207, %p208
      %s210 = ssub.s32 %s29, %s36
      %p211 = scmp.eq.s32.totalorder %s210, 0
      %s213 = sadd.s32 %s212, 1
      %s214 = scalar_select %p211, %s212, %s213
      %p217 = pneg %p211
      %p218 = scmp.eq.s32.totalorder %s29, 1
      %p219 = por %p217, %p218
      %p220 = scmp.ne.s32.totalorder %s212, %s215
      %p221 = scmp.eq.s32.totalorder %s29, 0
      %p222 = por %p220, %p221
      %p223 = scmp.ne.s32.totalorder %s212, %s215
      %p224 = scmp.eq.s32.totalorder %s34, 1
      %p225 = por %p223, %p224
      %p226 = scmp.ne.s32.totalorder %s215, %s216
      %p227 = scmp.eq.s32.totalorder %s34, 0
      %p228 = por %p226, %p227
      %p229 = scmp.ne.s32.totalorder %s215, %s216
      %p230 = scmp.eq.s32.totalorder %s35, 1
      %p231 = por %p229, %p230
      %p233 = scmp.ne.s32.totalorder %s216, %s232
      %p234 = scmp.eq.s32.totalorder %s35, 0
      %p235 = por %p233, %p234
      %s236 = ssub.s32 %s29, %s36
      %p237 = scmp.eq.s32.totalorder %s236, 0
      %s239 = sadd.s32 %s238, 1
      %s240 = scalar_select %p237, %s238, %s239
      %p243 = pneg %p237
      %p244 = scmp.eq.s32.totalorder %s29, 1
      %p245 = por %p243, %p244
      %p246 = scmp.ne.s32.totalorder %s238, %s241
      %p247 = scmp.eq.s32.totalorder %s29, 0
      %p248 = por %p246, %p247
      %p249 = scmp.ne.s32.totalorder %s238, %s241
      %p250 = scmp.eq.s32.totalorder %s34, 1
      %p251 = por %p249, %p250
      %p252 = scmp.ne.s32.totalorder %s241, %s242
      %p253 = scmp.eq.s32.totalorder %s34, 0
      %p254 = por %p252, %p253
      %p255 = scmp.ne.s32.totalorder %s241, %s242
      %p256 = scmp.eq.s32.totalorder %s35, 1
      %p257 = por %p255, %p256
      %p259 = scmp.ne.s32.totalorder %s242, %s258
      %p260 = scmp.eq.s32.totalorder %s35, 0
      %p261 = por %p259, %p260
      %p262 = scmp.le.s32.totalorder 1, %s29
      %p263 = scmp.lt.s32.totalorder %s29, 3
      %p264 = pnand %p262, %p263
      %p265 = pneg %p264
      // Predicated region
      $region9: #{tpu_custom_call.1} parent=5 // pred_check
        _
      $region10: #{tpu_custom_call.1} parent=5 // pred_check_branch
        %267 = sbr.rel (%p264) target = $region12
      $region11: #{tpu_custom_call.1} parent=5 // pred_region
        %s268 = ssub.s32 %s29, 1
        // Predicated region
        $region13: #{tpu_custom_call.1} parent=11 // pred_check
          %p269 = pneg %p76
        $region14: #{tpu_custom_call.1} parent=11 // pred_check_branch
          %271 = sbr.rel (%p269) target = $region16
        $region15: #{tpu_custom_call.1} parent=11 // pred_region
          %s273 = ssub.s32 576, 576
          %274 = vsyncadd [#allocation6], %s273
          %s275 = sshll.u32 [#allocation5], 4
          %s276 = int_to_ptr.vmem [resolvable:$true] %s275
          %281 = dma.hbm_to_vmem [thread:$0]  %s1, 576, %s276, [#allocation6], 64, 64, 4
        $region16: #{tpu_custom_call.1} parent=11 // pred_fallthru
          _
        // Predicated region
        $region17: #{tpu_custom_call.1} parent=11 // pred_check
          %p282 = pneg %p97
        $region18: #{tpu_custom_call.1} parent=11 // pred_check_branch
          %284 = sbr.rel (%p282) target = $region20
        $region19: #{tpu_custom_call.1} parent=11 // pred_region
          %s286 = ssub.s32 64, 64
          %287 = vsyncadd [#allocation6], %s286
          %s289 = sshll.u32 [#allocation7], 4
          %s290 = int_to_ptr.vmem [resolvable:$true] %s289
          %292 = dma.hbm_to_vmem [thread:$0]  %s2, 64, %s290, [#allocation6]
        $region20: #{tpu_custom_call.1} parent=11 // pred_fallthru
          _
        // Predicated region
        $region21: #{tpu_custom_call.1} parent=11 // pred_check
          %p293 = pneg %p118
        $region22: #{tpu_custom_call.1} parent=11 // pred_check_branch
          %295 = sbr.rel (%p293) target = $region24
        $region23: #{tpu_custom_call.1} parent=11 // pred_region
          %s297 = ssub.s32 64, 64
          %298 = vsyncadd [#allocation9], %s297
          %s300 = sshll.u32 [#allocation8], 4
          %s301 = int_to_ptr.vmem [resolvable:$true] %s300
          %303 = dma.hbm_to_vmem [thread:$0]  %s3, 64, %s301, [#allocation9]
        $region24: #{tpu_custom_call.1} parent=11 // pred_fallthru
          _
        // Predicated region
        $region25: #{tpu_custom_call.1} parent=11 // pred_check
          %p304 = pneg %p139
        $region26: #{tpu_custom_call.1} parent=11 // pred_check_branch
          %306 = sbr.rel (%p304) target = $region28
        $region27: #{tpu_custom_call.1} parent=11 // pred_region
          %s308 = ssub.s32 64, 64
          %309 = vsyncadd [#allocation9], %s308
          %s311 = sshll.u32 [#allocation10], 4
          %s312 = int_to_ptr.vmem [resolvable:$true] %s311
          %314 = dma.hbm_to_vmem [thread:$0]  %s4, 64, %s312, [#allocation9]
        $region28: #{tpu_custom_call.1} parent=11 // pred_fallthru
          _
        // Predicated region
        $region29: #{tpu_custom_call.1} parent=11 // pred_check
          %p315 = pneg %p160
        $region30: #{tpu_custom_call.1} parent=11 // pred_check_branch
          %317 = sbr.rel (%p315) target = $region32
        $region31: #{tpu_custom_call.1} parent=11 // pred_region
          %s319 = ssub.s32 128, 128
          %320 = vsyncadd [#allocation12], %s319
          %s322 = sshll.u32 [#allocation11], 4
          %s323 = int_to_ptr.vmem [resolvable:$true] %s322
          %325 = dma.hbm_to_vmem [thread:$0]  %s5, 128, %s323, [#allocation12]
        $region32: #{tpu_custom_call.1} parent=11 // pred_fallthru
          _
        // Predicated region
        $region33: #{tpu_custom_call.1} parent=11 // pred_check
          %p326 = pneg %p181
        $region34: #{tpu_custom_call.1} parent=11 // pred_check_branch
          %328 = sbr.rel (%p326) target = $region36
        $region35: #{tpu_custom_call.1} parent=11 // pred_region
          %s330 = ssub.s32 64, 64
          %331 = vsyncadd [#allocation12], %s330
          %s332 = sshll.u32 [#allocation13], 4
          %s333 = int_to_ptr.vmem [resolvable:$true] %s332
          %338 = dma.hbm_to_vmem [thread:$0]  %s6, 64, %s333, [#allocation12], 16, 16, 1
        $region36: #{tpu_custom_call.1} parent=11 // pred_fallthru
          _
        // Predicated region
        $region37: #{tpu_custom_call.1} parent=11 // pred_check
          %p339 = pneg %p202
        $region38: #{tpu_custom_call.1} parent=11 // pred_check_branch
          %341 = sbr.rel (%p339) target = $region40
        $region39: #{tpu_custom_call.1} parent=11 // pred_region
          %s343 = ssub.s32 16, 16
          %344 = vsyncadd [#allocation15], %s343
          %s346 = sshll.u32 [#allocation14], 4
          %s347 = int_to_ptr.vmem [resolvable:$true] %s346
          %349 = dma.hbm_to_vmem [thread:$0]  %s7, 16, %s347, [#allocation15]
        $region40: #{tpu_custom_call.1} parent=11 // pred_fallthru
          _
      $region12: #{tpu_custom_call.1} parent=5 // pred_fallthru
        _
      %p350 = scmp.lt.s32.totalorder %s29, 2
      // Predicated region
      $region41: #{tpu_custom_call.1} parent=5 // pred_check
        %p351 = pneg %p350
      $region42: #{tpu_custom_call.1} parent=5 // pred_check_branch
        %353 = sbr.rel (%p351) target = $region44
      $region43: #{tpu_custom_call.1} parent=5 // pred_region
        // Predicated region
        $region45: #{tpu_custom_call.1} parent=43 // pred_check
          %p354 = pneg %p49
        $region46: #{tpu_custom_call.1} parent=43 // pred_check_branch
          %356 = sbr.rel (%p354) target = $region48
        $region47: #{tpu_custom_call.1} parent=43 // pred_region
          %s357 = sand.u32 %s39, 1
          %s358 = scalar_lea.sflag [#allocation3], %s357
          %s359 = sand.u32 %s39, 1
          %s360 = smul.addr %s359, 16
          %s361 = scalar_lea.vmem [#allocation2], %s360
          %s363 = ssub.s32 256, 256
          %364 = vsyncadd %s358, %s363
          %s365 = smul.addr %s29, 4
          %s366 = smul.addr %s365, 64
          %s367 = scalar_lea.hbm %s0, %s366
          %s368 = sshll.u32 %s361, 4
          %s369 = int_to_ptr.vmem [resolvable:$true] %s368
          %374 = dma.hbm_to_vmem [thread:$0]  %s367, 256, %s369, %s358, 64, 64, 4
        $region48: #{tpu_custom_call.1} parent=43 // pred_fallthru
          _
      $region44: #{tpu_custom_call.1} parent=5 // pred_fallthru
        _
      %p375 = scmp.le.s32.totalorder 1, %s29
      %p376 = scmp.lt.s32.totalorder %s29, 3
      %p377 = pnand %p375, %p376
      %p378 = pneg %p377
      // Predicated region
      $region49: #{tpu_custom_call.1} parent=5 // pred_check
        _
      $region50: #{tpu_custom_call.1} parent=5 // pred_check_branch
        %380 = sbr.rel (%p377) target = $region52
      $region51: #{tpu_custom_call.1} parent=5 // pred_region
        %s381 = ssub.s32 %s29, 1
        %s382 = sand.u32 %s42, 1
        %s383 = scalar_lea.sflag [#allocation3], %s382
        %s384 = sand.u32 %s42, 1
        %s385 = smul.addr %s384, 16
        %s386 = scalar_lea.vmem [#allocation2], %s385
        // Predicated region
        $region53: #{tpu_custom_call.1} parent=51 // pred_check
          %p387 = pneg %p55
        $region54: #{tpu_custom_call.1} parent=51 // pred_check_branch
          %389 = sbr.rel (%p387) target = $region56
        $region55: #{tpu_custom_call.1} parent=51 // pred_region
          %390 = dma.done %s383, 256
        $region56: #{tpu_custom_call.1} parent=51 // pred_fallthru
          _
        // Predicated region
        $region57: #{tpu_custom_call.1} parent=51 // pred_check
          %p391 = pneg %p76
        $region58: #{tpu_custom_call.1} parent=51 // pred_check_branch
          %393 = sbr.rel (%p391) target = $region60
        $region59: #{tpu_custom_call.1} parent=51 // pred_region
          %394 = dma.done [#allocation6], 576
        $region60: #{tpu_custom_call.1} parent=51 // pred_fallthru
          _
        // Predicated region
        $region61: #{tpu_custom_call.1} parent=51 // pred_check
          %p395 = pneg %p97
        $region62: #{tpu_custom_call.1} parent=51 // pred_check_branch
          %397 = sbr.rel (%p395) target = $region64
        $region63: #{tpu_custom_call.1} parent=51 // pred_region
          %398 = dma.done [#allocation6], 64
        $region64: #{tpu_custom_call.1} parent=51 // pred_fallthru
          _
        // Predicated region
        $region65: #{tpu_custom_call.1} parent=51 // pred_check
          %p399 = pneg %p118
        $region66: #{tpu_custom_call.1} parent=51 // pred_check_branch
          %401 = sbr.rel (%p399) target = $region68
        $region67: #{tpu_custom_call.1} parent=51 // pred_region
          %402 = dma.done [#allocation9], 64
        $region68: #{tpu_custom_call.1} parent=51 // pred_fallthru
          _
        // Predicated region
        $region69: #{tpu_custom_call.1} parent=51 // pred_check
          %p403 = pneg %p139
        $region70: #{tpu_custom_call.1} parent=51 // pred_check_branch
          %405 = sbr.rel (%p403) target = $region72
        $region71: #{tpu_custom_call.1} parent=51 // pred_region
          %406 = dma.done [#allocation9], 64
        $region72: #{tpu_custom_call.1} parent=51 // pred_fallthru
          _
        // Predicated region
        $region73: #{tpu_custom_call.1} parent=51 // pred_check
          %p407 = pneg %p160
        $region74: #{tpu_custom_call.1} parent=51 // pred_check_branch
          %409 = sbr.rel (%p407) target = $region76
        $region75: #{tpu_custom_call.1} parent=51 // pred_region
          %410 = dma.done [#allocation12], 128
        $region76: #{tpu_custom_call.1} parent=51 // pred_fallthru
          _
        // Predicated region
        $region77: #{tpu_custom_call.1} parent=51 // pred_check
          %p411 = pneg %p181
        $region78: #{tpu_custom_call.1} parent=51 // pred_check_branch
          %413 = sbr.rel (%p411) target = $region80
        $region79: #{tpu_custom_call.1} parent=51 // pred_region
          %414 = dma.done [#allocation12], 64
        $region80: #{tpu_custom_call.1} parent=51 // pred_fallthru
          _
        // Predicated region
        $region81: #{tpu_custom_call.1} parent=51 // pred_check
          %p415 = pneg %p202
        $region82: #{tpu_custom_call.1} parent=51 // pred_check_branch
          %417 = sbr.rel (%p415) target = $region84
        $region83: #{tpu_custom_call.1} parent=51 // pred_region
          %418 = dma.done [#allocation15], 16
        $region84: #{tpu_custom_call.1} parent=51 // pred_fallthru
          _
        %s419 = sand.u32 %s42, 1
        %s420 = scalar_lea.sflag [#allocation3], %s419
        %s421 = sand.u32 %s42, 1
        %s422 = smul.addr %s421, 16
        %s423 = scalar_lea.vmem [#allocation2], %s422
        %p424 = pneg %p55
        %p425 = pneg %p52
        %p426 = pneg %p76
        %p427 = pneg %p73
        %p428 = pneg %p97
        %p429 = pneg %p94
        %p430 = pneg %p118
        %p431 = pneg %p115
        %p432 = pneg %p139
        %p433 = pneg %p136
        %p434 = pneg %p160
        %p435 = pneg %p157
        %p436 = pneg %p181
        %p437 = pneg %p178
        %p438 = pneg %p202
        %p439 = pneg %p199
        %p440 = pneg %p228
        %p441 = pneg %p225
        %s442 = sand.u32 %s215, 1
        %s443 = scalar_lea.sflag [#allocation4], %s442
        %s444 = sand.u32 %s215, 1
        %s445 = smul.addr %s444, 4
        %s446 = scalar_lea.vmem [#allocation16], %s445
        %p447 = pneg %p254
        %p448 = pneg %p251
        %s449 = sand.u32 %s241, 1
        %s450 = scalar_lea.sflag [#allocation18], %s449
        %s451 = sand.u32 %s241, 1
        %s452 = smul.addr %s451, 8
        %s453 = scalar_lea.vmem [#allocation17], %s452
        %v455 = vld [vmem:[%s386] sm:$0xf]
        %v456 = vld [vmem:[#allocation8] sm:$0xf]
        %458 = vset.pattern.permute.xlu0 0
        %459 = vperm.xlu0 %458, %v456
        %v460 = vpop.permute.xlu0 %459
        %v462 = vmul.f32 %v455, %v460
        %v463 = vld [vmem:[#allocation10] sm:$0xf]
        %465 = vset.pattern.permute.xlu0 0
        %466 = vperm.xlu0 %465, %v463
        %v467 = vpop.permute.xlu0 %466
        %v469 = vadd.f32 %v462, %v467
        %v470 = vmax.f32 %v469, 0.0
        %v471 = vld [vmem:[#allocation13] sm:$0x1]
        %v473 = vlaneseq
        %v474 = vshrl.u32 %v473, 7
        %v475 = vsub.s32 0, %v474
        %v476 = vrot.slane %v471, %v475
        %v478 = vmul.f32 %v470, %v476
        %v479 = vpack.c.bf16 %v478, %v478
        %s480 = scalar_lea.vmem %s386, 4 [#allocation2]
        %v481 = vld [vmem:[%s480] sm:$0xf]
        %v482 = vmul.f32 %v481, %v460
        %v483 = vadd.f32 %v482, %v467
        %v484 = vmax.f32 %v483, 0.0
        %s485 = scalar_lea.vmem [#allocation13], 1
        %v486 = vld [vmem:[%s485] sm:$0x1]
        %v488 = vlaneseq
        %v489 = vshrl.u32 %v488, 7
        %v490 = vsub.s32 0, %v489
        %v491 = vrot.slane %v486, %v490
        %v493 = vmul.f32 %v484, %v491
        %v494 = vpack.c.bf16 %v493, %v493
        %s495 = scalar_lea.vmem %s386, 8 [#allocation2]
        %v496 = vld [vmem:[%s495] sm:$0xf]
        %v497 = vmul.f32 %v496, %v460
        %v498 = vadd.f32 %v497, %v467
        %v499 = vmax.f32 %v498, 0.0
        %s500 = scalar_lea.vmem [#allocation13], 2
        %v501 = vld [vmem:[%s500] sm:$0x1]
        %v503 = vlaneseq
        %v504 = vshrl.u32 %v503, 7
        %v505 = vsub.s32 0, %v504
        %v506 = vrot.slane %v501, %v505
        %v508 = vmul.f32 %v499, %v506
        %v509 = vpack.c.bf16 %v508, %v508
        %s510 = scalar_lea.vmem %s386, 12 [#allocation2]
        %v511 = vld [vmem:[%s510] sm:$0xf]
        %v512 = vmul.f32 %v511, %v460
        %v513 = vadd.f32 %v512, %v467
        %v514 = vmax.f32 %v513, 0.0
        %s515 = scalar_lea.vmem [#allocation13], 3
        %v516 = vld [vmem:[%s515] sm:$0x1]
        %v518 = vlaneseq
        %v519 = vshrl.u32 %v518, 7
        %v520 = vsub.s32 0, %v519
        %v521 = vrot.slane %v516, %v520
        %v523 = vmul.f32 %v514, %v521
        %v524 = vpack.c.bf16 %v523, %v523
        %v525 = vld [vmem:[#allocation5] sm:$0xf]
        %s526 = scalar_lea.vmem [#allocation5], 4
        %v527 = vld [vmem:[%s526] sm:$0xf]
        %vm528 = vcmask 31744
        %v530 = vsel %vm528, %v527, 0
        %vm532 = vcmask 1041408
        %v534 = vsel %vm532, %v494, 0
        %536 = vmatprep.subr.bf16.mxu0 0
        %537 = vmatpush1.bf16.msra.mxu0 %v534
        %538 = vmatprep.subr.bf16.mxu0 0
        %539 = vmatpush1.bf16.msra.mxu0 0
        %540 = vmatprep.subr.bf16.mxu0 0
        %541 = vmatpush1.bf16.msra.mxu0 0
        %542 = vmatprep.subr.bf16.mxu0 0
        %543 = vmatpush1.bf16.msra.mxu0 0
        %544 = vmatprep.subr.bf16.mxu0 0
        %545 = vmatpush1.bf16.msra.mxu0 0
        %546 = vmatprep.subr.bf16.mxu0 0
        %547 = vmatpush1.bf16.msra.mxu0 0
        %548 = vmatprep.subr.bf16.mxu0 0
        %549 = vmatpush1.bf16.msra.mxu0 0
        %550 = vmatprep.subr.bf16.mxu0 0
        %551 = vmatpush1.bf16.msra.mxu0 0
        %552 = vmatprep.subr.bf16.mxu0 0
        %553 = vmatpush1.bf16.msra.mxu0 0
        %554 = vmatprep.subr.bf16.mxu0 0
        %555 = vmatpush1.bf16.msra.mxu0 0
        %556 = vmatprep.subr.bf16.mxu0 0
        %557 = vmatpush1.bf16.msra.mxu0 0
        %558 = vmatprep.subr.bf16.mxu0 0
        %559 = vmatpush1.bf16.msra.mxu0 0
        %560 = vmatprep.subr.bf16.mxu0 0
        %561 = vmatpush1.bf16.msra.mxu0 0
        %562 = vmatprep.subr.bf16.mxu0 0
        %563 = vmatpush1.bf16.msra.mxu0 0
        %564 = vmatprep.subr.bf16.mxu0 0
        %565 = vmatpush1.bf16.msra.mxu0 0
        %566 = vmatprep.subr.bf16.mxu0 0
        %567 = vmatpush1.bf16.msra.mxu0 0
        %568 = vmatprep.mubr.bf16.mxu0 0
        %569 = vmatmul.mubr.bf16.gmra.mrb[0].mxu0 %v530
        %v570 = vpop.f32.mrb[0].mxu0
        %v571 = vadd.f32 0.0, %v570
        %v572 = vpop.f32.mrb[0].mxu0
        %v573 = vpop.f32.mrb[0].mxu0
        %v574 = vpop.f32.mrb[0].mxu0
        %575 = vdwg.mxu0
        %v577 = vsel %vm528, %v525, 0
        %v580 = vsel %vm532, %v479, 0
        %582 = vmatprep.subr.bf16.mxu0 0
        %583 = vmatpush1.bf16.msra.mxu0 %v580
        %584 = vmatprep.subr.bf16.mxu0 0
        %585 = vmatpush1.bf16.msra.mxu0 0
        %586 = vmatprep.subr.bf16.mxu0 0
        %587 = vmatpush1.bf16.msra.mxu0 0
        %588 = vmatprep.subr.bf16.mxu0 0
        %589 = vmatpush1.bf16.msra.mxu0 0
        %590 = vmatprep.subr.bf16.mxu0 0
        %591 = vmatpush1.bf16.msra.mxu0 0
        %592 = vmatprep.subr.bf16.mxu0 0
        %593 = vmatpush1.bf16.msra.mxu0 0
        %594 = vmatprep.subr.bf16.mxu0 0
        %595 = vmatpush1.bf16.msra.mxu0 0
        %596 = vmatprep.subr.bf16.mxu0 0
        %597 = vmatpush1.bf16.msra.mxu0 0
        %598 = vmatprep.subr.bf16.mxu0 0
        %599 = vmatpush1.bf16.msra.mxu0 0
        %600 = vmatprep.subr.bf16.mxu0 0
        %601 = vmatpush1.bf16.msra.mxu0 0
        %602 = vmatprep.subr.bf16.mxu0 0
        %603 = vmatpush1.bf16.msra.mxu0 0
        %604 = vmatprep.subr.bf16.mxu0 0
        %605 = vmatpush1.bf16.msra.mxu0 0
        %606 = vmatprep.subr.bf16.mxu0 0
        %607 = vmatpush1.bf16.msra.mxu0 0
        %608 = vmatprep.subr.bf16.mxu0 0
        %609 = vmatpush1.bf16.msra.mxu0 0
        %610 = vmatprep.subr.bf16.mxu0 0
        %611 = vmatpush1.bf16.msra.mxu0 0
        %612 = vmatprep.subr.bf16.mxu0 0
        %613 = vmatpush1.bf16.msra.mxu0 0
        %614 = vmatprep.mubr.bf16.mxu0 0
        %615 = vmatmul.mubr.bf16.gmra.mrb[0].mxu0 %v577
        %v616 = vpop.f32.mrb[0].mxu0
        %v617 = vadd.f32 %v571, %v616
        %v618 = vpop.f32.mrb[0].mxu0
        %v619 = vpop.f32.mrb[0].mxu0
        %v620 = vpop.f32.mrb[0].mxu0
        %621 = vdwg.mxu0
        %s622 = scalar_lea.vmem [#allocation5], 8
        %v623 = vld [vmem:[%s622] sm:$0xf]
        %625 = vrot.lane.b32.xlu0 %v479, 127
        %v626 = vpop.permute.xlu0 %625
        %v628 = vsel %vm528, %v623, 0
        %v631 = vsel %vm532, %v626, 0
        %633 = vmatprep.subr.bf16.mxu0 0
        %634 = vmatpush1.bf16.msra.mxu0 %v631
        %635 = vmatprep.subr.bf16.mxu0 0
        %636 = vmatpush1.bf16.msra.mxu0 0
        %637 = vmatprep.subr.bf16.mxu0 0
        %638 = vmatpush1.bf16.msra.mxu0 0
        %639 = vmatprep.subr.bf16.mxu0 0
        %640 = vmatpush1.bf16.msra.mxu0 0
        %641 = vmatprep.subr.bf16.mxu0 0
        %642 = vmatpush1.bf16.msra.mxu0 0
        %643 = vmatprep.subr.bf16.mxu0 0
        %644 = vmatpush1.bf16.msra.mxu0 0
        %645 = vmatprep.subr.bf16.mxu0 0
        %646 = vmatpush1.bf16.msra.mxu0 0
        %647 = vmatprep.subr.bf16.mxu0 0
        %648 = vmatpush1.bf16.msra.mxu0 0
        %649 = vmatprep.subr.bf16.mxu0 0
        %650 = vmatpush1.bf16.msra.mxu0 0
        %651 = vmatprep.subr.bf16.mxu0 0
        %652 = vmatpush1.bf16.msra.mxu0 0
        %653 = vmatprep.subr.bf16.mxu0 0
        %654 = vmatpush1.bf16.msra.mxu0 0
        %655 = vmatprep.subr.bf16.mxu0 0
        %656 = vmatpush1.bf16.msra.mxu0 0
        %657 = vmatprep.subr.bf16.mxu0 0
        %658 = vmatpush1.bf16.msra.mxu0 0
        %659 = vmatprep.subr.bf16.mxu0 0
        %660 = vmatpush1.bf16.msra.mxu0 0
        %661 = vmatprep.subr.bf16.mxu0 0
        %662 = vmatpush1.bf16.msra.mxu0 0
        %663 = vmatprep.subr.bf16.mxu0 0
        %664 = vmatpush1.bf16.msra.mxu0 0
        %665 = vmatprep.mubr.bf16.mxu0 0
        %666 = vmatmul.mubr.bf16.gmra.mrb[0].mxu0 %v628
        %v667 = vpop.f32.mrb[0].mxu0
        %v668 = vadd.f32 0.0, %v667
        %v669 = vpop.f32.mrb[0].mxu0
        %v670 = vpop.f32.mrb[0].mxu0
        %v671 = vpop.f32.mrb[0].mxu0
        %672 = vdwg.mxu0
        %v673 = vadd.f32 %v617, %v668
        %s674 = scalar_lea.vmem [#allocation5], 12
        %v675 = vld [vmem:[%s674] sm:$0xf]
        %v677 = vsel %vm528, %v675, 0
        %v680 = vsel %vm532, %v509, 0
        %682 = vmatprep.subr.bf16.mxu0 0
        %683 = vmatpush1.bf16.msra.mxu0 %v680
        %684 = vmatprep.subr.bf16.mxu0 0
        %685 = vmatpush1.bf16.msra.mxu0 0
        %686 = vmatprep.subr.bf16.mxu0 0
        %687 = vmatpush1.bf16.msra.mxu0 0
        %688 = vmatprep.subr.bf16.mxu0 0
        %689 = vmatpush1.bf16.msra.mxu0 0
        %690 = vmatprep.subr.bf16.mxu0 0
        %691 = vmatpush1.bf16.msra.mxu0 0
        %692 = vmatprep.subr.bf16.mxu0 0
        %693 = vmatpush1.bf16.msra.mxu0 0
        %694 = vmatprep.subr.bf16.mxu0 0
        %695 = vmatpush1.bf16.msra.mxu0 0
        %696 = vmatprep.subr.bf16.mxu0 0
        %697 = vmatpush1.bf16.msra.mxu0 0
        %698 = vmatprep.subr.bf16.mxu0 0
        %699 = vmatpush1.bf16.msra.mxu0 0
        %700 = vmatprep.subr.bf16.mxu0 0
        %701 = vmatpush1.bf16.msra.mxu0 0
        %702 = vmatprep.subr.bf16.mxu0 0
        %703 = vmatpush1.bf16.msra.mxu0 0
        %704 = vmatprep.subr.bf16.mxu0 0
        %705 = vmatpush1.bf16.msra.mxu0 0
        %706 = vmatprep.subr.bf16.mxu0 0
        %707 = vmatpush1.bf16.msra.mxu0 0
        %708 = vmatprep.subr.bf16.mxu0 0
        %709 = vmatpush1.bf16.msra.mxu0 0
        %710 = vmatprep.subr.bf16.mxu0 0
        %711 = vmatpush1.bf16.msra.mxu0 0
        %712 = vmatprep.subr.bf16.mxu0 0
        %713 = vmatpush1.bf16.msra.mxu0 0
        %714 = vmatprep.mubr.bf16.mxu0 0
        %715 = vmatmul.mubr.bf16.gmra.mrb[0].mxu0 %v677
        %v716 = vpop.f32.mrb[0].mxu0
        %v717 = vadd.f32 0.0, %v716
        %v718 = vpop.f32.mrb[0].mxu0
        %v719 = vpop.f32.mrb[0].mxu0
        %v720 = vpop.f32.mrb[0].mxu0
        %721 = vdwg.mxu0
        %v722 = vadd.f32 %v673, %v717
        %s723 = scalar_lea.vmem [#allocation5], 16
        %v724 = vld [vmem:[%s723] sm:$0xf]
        %v726 = vsel %vm528, %v724, 0
        %v729 = vsel %vm532, %v524, 0
        %731 = vmatprep.subr.bf16.mxu0 0
        %732 = vmatpush1.bf16.msra.mxu0 %v729
        %733 = vmatprep.subr.bf16.mxu0 0
        %734 = vmatpush1.bf16.msra.mxu0 0
        %735 = vmatprep.subr.bf16.mxu0 0
        %736 = vmatpush1.bf16.msra.mxu0 0
        %737 = vmatprep.subr.bf16.mxu0 0
        %738 = vmatpush1.bf16.msra.mxu0 0
        %739 = vmatprep.subr.bf16.mxu0 0
        %740 = vmatpush1.bf16.msra.mxu0 0
        %741 = vmatprep.subr.bf16.mxu0 0
        %742 = vmatpush1.bf16.msra.mxu0 0
        %743 = vmatprep.subr.bf16.mxu0 0
        %744 = vmatpush1.bf16.msra.mxu0 0
        %745 = vmatprep.subr.bf16.mxu0 0
        %746 = vmatpush1.bf16.msra.mxu0 0
        %747 = vmatprep.subr.bf16.mxu0 0
        %748 = vmatpush1.bf16.msra.mxu0 0
        %749 = vmatprep.subr.bf16.mxu0 0
        %750 = vmatpush1.bf16.msra.mxu0 0
        %751 = vmatprep.subr.bf16.mxu0 0
        %752 = vmatpush1.bf16.msra.mxu0 0
        %753 = vmatprep.subr.bf16.mxu0 0
        %754 = vmatpush1.bf16.msra.mxu0 0
        %755 = vmatprep.subr.bf16.mxu0 0
        %756 = vmatpush1.bf16.msra.mxu0 0
        %757 = vmatprep.subr.bf16.mxu0 0
        %758 = vmatpush1.bf16.msra.mxu0 0
        %759 = vmatprep.subr.bf16.mxu0 0
        %760 = vmatpush1.bf16.msra.mxu0 0
        %761 = vmatprep.subr.bf16.mxu0 0
        %762 = vmatpush1.bf16.msra.mxu0 0
        %763 = vmatprep.mubr.bf16.mxu0 0
        %764 = vmatmul.mubr.bf16.gmra.mrb[0].mxu0 %v726
        %v765 = vpop.f32.mrb[0].mxu0
        %v766 = vadd.f32 0.0, %v765
        %v767 = vpop.f32.mrb[0].mxu0
        %v768 = vpop.f32.mrb[0].mxu0
        %v769 = vpop.f32.mrb[0].mxu0
        %770 = vdwg.mxu0
        %v771 = vadd.f32 %v722, %v766
        %s772 = scalar_lea.vmem [#allocation5], 20
        %v773 = vld [vmem:[%s772] sm:$0xf]
        %775 = vrot.lane.b32.xlu0 %v509, 127
        %v776 = vpop.permute.xlu0 %775
        %v778 = vsel %vm528, %v773, 0
        %v781 = vsel %vm532, %v776, 0
        %783 = vmatprep.subr.bf16.mxu0 0
        %784 = vmatpush1.bf16.msra.mxu0 %v781
        %785 = vmatprep.subr.bf16.mxu0 0
        %786 = vmatpush1.bf16.msra.mxu0 0
        %787 = vmatprep.subr.bf16.mxu0 0
        %788 = vmatpush1.bf16.msra.mxu0 0
        %789 = vmatprep.subr.bf16.mxu0 0
        %790 = vmatpush1.bf16.msra.mxu0 0
        %791 = vmatprep.subr.bf16.mxu0 0
        %792 = vmatpush1.bf16.msra.mxu0 0
        %793 = vmatprep.subr.bf16.mxu0 0
        %794 = vmatpush1.bf16.msra.mxu0 0
        %795 = vmatprep.subr.bf16.mxu0 0
        %796 = vmatpush1.bf16.msra.mxu0 0
        %797 = vmatprep.subr.bf16.mxu0 0
        %798 = vmatpush1.bf16.msra.mxu0 0
        %799 = vmatprep.subr.bf16.mxu0 0
        %800 = vmatpush1.bf16.msra.mxu0 0
        %801 = vmatprep.subr.bf16.mxu0 0
        %802 = vmatpush1.bf16.msra.mxu0 0
        %803 = vmatprep.subr.bf16.mxu0 0
        %804 = vmatpush1.bf16.msra.mxu0 0
        %805 = vmatprep.subr.bf16.mxu0 0
        %806 = vmatpush1.bf16.msra.mxu0 0
        %807 = vmatprep.subr.bf16.mxu0 0
        %808 = vmatpush1.bf16.msra.mxu0 0
        %809 = vmatprep.subr.bf16.mxu0 0
        %810 = vmatpush1.bf16.msra.mxu0 0
        %811 = vmatprep.subr.bf16.mxu0 0
        %812 = vmatpush1.bf16.msra.mxu0 0
        %813 = vmatprep.subr.bf16.mxu0 0
        %814 = vmatpush1.bf16.msra.mxu0 0
        %815 = vmatprep.mubr.bf16.mxu0 0
        %816 = vmatmul.mubr.bf16.gmra.mrb[0].mxu0 %v778
        %v817 = vpop.f32.mrb[0].mxu0
        %v818 = vadd.f32 0.0, %v817
        %v819 = vpop.f32.mrb[0].mxu0
        %v820 = vpop.f32.mrb[0].mxu0
        %v821 = vpop.f32.mrb[0].mxu0
        %822 = vdwg.mxu0
        %v823 = vadd.f32 %v771, %v818
        %s824 = scalar_lea.vmem [#allocation5], 24
        %v825 = vld [vmem:[%s824] sm:$0xf]
        %826 = vrot.lane.b32.xlu0 %v479, 118
        %v827 = vpop.permute.xlu0 %826
        %v829 = vsel %vm528, %v825, 0
        %v832 = vsel %vm532, %v827, 0
        %834 = vmatprep.subr.bf16.mxu0 0
        %835 = vmatpush1.bf16.msra.mxu0 %v832
        %836 = vmatprep.subr.bf16.mxu0 0
        %837 = vmatpush1.bf16.msra.mxu0 0
        %838 = vmatprep.subr.bf16.mxu0 0
        %839 = vmatpush1.bf16.msra.mxu0 0
        %840 = vmatprep.subr.bf16.mxu0 0
        %841 = vmatpush1.bf16.msra.mxu0 0
        %842 = vmatprep.subr.bf16.mxu0 0
        %843 = vmatpush1.bf16.msra.mxu0 0
        %844 = vmatprep.subr.bf16.mxu0 0
        %845 = vmatpush1.bf16.msra.mxu0 0
        %846 = vmatprep.subr.bf16.mxu0 0
        %847 = vmatpush1.bf16.msra.mxu0 0
        %848 = vmatprep.subr.bf16.mxu0 0
        %849 = vmatpush1.bf16.msra.mxu0 0
        %850 = vmatprep.subr.bf16.mxu0 0
        %851 = vmatpush1.bf16.msra.mxu0 0
        %852 = vmatprep.subr.bf16.mxu0 0
        %853 = vmatpush1.bf16.msra.mxu0 0
        %854 = vmatprep.subr.bf16.mxu0 0
        %855 = vmatpush1.bf16.msra.mxu0 0
        %856 = vmatprep.subr.bf16.mxu0 0
        %857 = vmatpush1.bf16.msra.mxu0 0
        %858 = vmatprep.subr.bf16.mxu0 0
        %859 = vmatpush1.bf16.msra.mxu0 0
        %860 = vmatprep.subr.bf16.mxu0 0
        %861 = vmatpush1.bf16.msra.mxu0 0
        %862 = vmatprep.subr.bf16.mxu0 0
        %863 = vmatpush1.bf16.msra.mxu0 0
        %864 = vmatprep.subr.bf16.mxu0 0
        %865 = vmatpush1.bf16.msra.mxu0 0
        %866 = vmatprep.mubr.bf16.mxu0 0
        %867 = vmatmul.mubr.bf16.gmra.mrb[0].mxu0 %v829
        %v868 = vpop.f32.mrb[0].mxu0
        %v869 = vadd.f32 0.0, %v868
        %v870 = vpop.f32.mrb[0].mxu0
        %v871 = vpop.f32.mrb[0].mxu0
        %v872 = vpop.f32.mrb[0].mxu0
        %873 = vdwg.mxu0
        %v874 = vadd.f32 %v823, %v869
        %s875 = scalar_lea.vmem [#allocation5], 28
        %v876 = vld [vmem:[%s875] sm:$0xf]
        %878 = vrot.lane.b32.xlu0 %v494, 118
        %v879 = vpop.permute.xlu0 %878
        %v881 = vsel %vm528, %v876, 0
        %v884 = vsel %vm532, %v879, 0
        %886 = vmatprep.subr.bf16.mxu0 0
        %887 = vmatpush1.bf16.msra.mxu0 %v884
        %888 = vmatprep.subr.bf16.mxu0 0
        %889 = vmatpush1.bf16.msra.mxu0 0
        %890 = vmatprep.subr.bf16.mxu0 0
        %891 = vmatpush1.bf16.msra.mxu0 0
        %892 = vmatprep.subr.bf16.mxu0 0
        %893 = vmatpush1.bf16.msra.mxu0 0
        %894 = vmatprep.subr.bf16.mxu0 0
        %895 = vmatpush1.bf16.msra.mxu0 0
        %896 = vmatprep.subr.bf16.mxu0 0
        %897 = vmatpush1.bf16.msra.mxu0 0
        %898 = vmatprep.subr.bf16.mxu0 0
        %899 = vmatpush1.bf16.msra.mxu0 0
        %900 = vmatprep.subr.bf16.mxu0 0
        %901 = vmatpush1.bf16.msra.mxu0 0
        %902 = vmatprep.subr.bf16.mxu0 0
        %903 = vmatpush1.bf16.msra.mxu0 0
        %904 = vmatprep.subr.bf16.mxu0 0
        %905 = vmatpush1.bf16.msra.mxu0 0
        %906 = vmatprep.subr.bf16.mxu0 0
        %907 = vmatpush1.bf16.msra.mxu0 0
        %908 = vmatprep.subr.bf16.mxu0 0
        %909 = vmatpush1.bf16.msra.mxu0 0
        %910 = vmatprep.subr.bf16.mxu0 0
        %911 = vmatpush1.bf16.msra.mxu0 0
        %912 = vmatprep.subr.bf16.mxu0 0
        %913 = vmatpush1.bf16.msra.mxu0 0
        %914 = vmatprep.subr.bf16.mxu0 0
        %915 = vmatpush1.bf16.msra.mxu0 0
        %916 = vmatprep.subr.bf16.mxu0 0
        %917 = vmatpush1.bf16.msra.mxu0 0
        %918 = vmatprep.mubr.bf16.mxu0 0
        %919 = vmatmul.mubr.bf16.gmra.mrb[0].mxu0 %v881
        %v920 = vpop.f32.mrb[0].mxu0
        %v921 = vadd.f32 0.0, %v920
        %v922 = vpop.f32.mrb[0].mxu0
        %v923 = vpop.f32.mrb[0].mxu0
        %v924 = vpop.f32.mrb[0].mxu0
        %925 = vdwg.mxu0
        %v926 = vadd.f32 %v874, %v921
        %s927 = scalar_lea.vmem [#allocation5], 32
        %v928 = vld [vmem:[%s927] sm:$0xf]
        %929 = vrot.lane.b32.xlu0 %v479, 117
        %v930 = vpop.permute.xlu0 %929
        %v932 = vsel %vm528, %v928, 0
        %v935 = vsel %vm532, %v930, 0
        %937 = vmatprep.subr.bf16.mxu0 0
        %938 = vmatpush1.bf16.msra.mxu0 %v935
        %939 = vmatprep.subr.bf16.mxu0 0
        %940 = vmatpush1.bf16.msra.mxu0 0
        %941 = vmatprep.subr.bf16.mxu0 0
        %942 = vmatpush1.bf16.msra.mxu0 0
        %943 = vmatprep.subr.bf16.mxu0 0
        %944 = vmatpush1.bf16.msra.mxu0 0
        %945 = vmatprep.subr.bf16.mxu0 0
        %946 = vmatpush1.bf16.msra.mxu0 0
        %947 = vmatprep.subr.bf16.mxu0 0
        %948 = vmatpush1.bf16.msra.mxu0 0
        %949 = vmatprep.subr.bf16.mxu0 0
        %950 = vmatpush1.bf16.msra.mxu0 0
        %951 = vmatprep.subr.bf16.mxu0 0
        %952 = vmatpush1.bf16.msra.mxu0 0
        %953 = vmatprep.subr.bf16.mxu0 0
        %954 = vmatpush1.bf16.msra.mxu0 0
        %955 = vmatprep.subr.bf16.mxu0 0
        %956 = vmatpush1.bf16.msra.mxu0 0
        %957 = vmatprep.subr.bf16.mxu0 0
        %958 = vmatpush1.bf16.msra.mxu0 0
        %959 = vmatprep.subr.bf16.mxu0 0
        %960 = vmatpush1.bf16.msra.mxu0 0
        %961 = vmatprep.subr.bf16.mxu0 0
        %962 = vmatpush1.bf16.msra.mxu0 0
        %963 = vmatprep.subr.bf16.mxu0 0
        %964 = vmatpush1.bf16.msra.mxu0 0
        %965 = vmatprep.subr.bf16.mxu0 0
        %966 = vmatpush1.bf16.msra.mxu0 0
        %967 = vmatprep.subr.bf16.mxu0 0
        %968 = vmatpush1.bf16.msra.mxu0 0
        %969 = vmatprep.mubr.bf16.mxu0 0
        %970 = vmatmul.mubr.bf16.gmra.mrb[0].mxu0 %v932
        %v971 = vpop.f32.mrb[0].mxu0
        %v972 = vadd.f32 0.0, %v971
        %v973 = vpop.f32.mrb[0].mxu0
        %v974 = vpop.f32.mrb[0].mxu0
        %v975 = vpop.f32.mrb[0].mxu0
        %976 = vdwg.mxu0
        %v977 = vadd.f32 %v926, %v972
        %v978 = vld [vmem:[#allocation7] sm:$0xf]
        %v980 = vsel %vm528, %v978, 0
        %982 = vmatprep.subr.bf16.mxu0 0
        %983 = vmatpush1.bf16.msra.mxu0 %v729
        %984 = vmatprep.subr.bf16.mxu0 0
        %985 = vmatpush1.bf16.msra.mxu0 0
        %986 = vmatprep.subr.bf16.mxu0 0
        %987 = vmatpush1.bf16.msra.mxu0 0
        %988 = vmatprep.subr.bf16.mxu0 0
        %989 = vmatpush1.bf16.msra.mxu0 0
        %990 = vmatprep.subr.bf16.mxu0 0
        %991 = vmatpush1.bf16.msra.mxu0 0
        %992 = vmatprep.subr.bf16.mxu0 0
        %993 = vmatpush1.bf16.msra.mxu0 0
        %994 = vmatprep.subr.bf16.mxu0 0
        %995 = vmatpush1.bf16.msra.mxu0 0
        %996 = vmatprep.subr.bf16.mxu0 0
        %997 = vmatpush1.bf16.msra.mxu0 0
        %998 = vmatprep.subr.bf16.mxu0 0
        %999 = vmatpush1.bf16.msra.mxu0 0
        %1000 = vmatprep.subr.bf16.mxu0 0
        %1001 = vmatpush1.bf16.msra.mxu0 0
        %1002 = vmatprep.subr.bf16.mxu0 0
        %1003 = vmatpush1.bf16.msra.mxu0 0
        %1004 = vmatprep.subr.bf16.mxu0 0
        %1005 = vmatpush1.bf16.msra.mxu0 0
        %1006 = vmatprep.subr.bf16.mxu0 0
        %1007 = vmatpush1.bf16.msra.mxu0 0
        %1008 = vmatprep.subr.bf16.mxu0 0
        %1009 = vmatpush1.bf16.msra.mxu0 0
        %1010 = vmatprep.subr.bf16.mxu0 0
        %1011 = vmatpush1.bf16.msra.mxu0 0
        %1012 = vmatprep.subr.bf16.mxu0 0
        %1013 = vmatpush1.bf16.msra.mxu0 0
        %1014 = vmatprep.mubr.bf16.mxu0 0
        %1015 = vmatmul.mubr.bf16.gmra.mrb[0].mxu0 %v980
        %v1016 = vpop.f32.mrb[0].mxu0
        %v1017 = vadd.f32 0.0, %v1016
        %v1018 = vpop.f32.mrb[0].mxu0
        %v1019 = vpop.f32.mrb[0].mxu0
        %v1020 = vpop.f32.mrb[0].mxu0
        %1021 = vdwg.mxu0
        %v1022 = vld [vmem:[#allocation14] sm:$0x1]
        %v1023 = vld [vmem:[#allocation11] sm:$0xff]
        %1025 = vset.pattern.permute.xlu0 0
        %1026 = vperm.xlu0 %1025, %v1023
        %v1027 = vpop.permute.xlu0 %1026
        %v1029 = vadd.f32 %v977, %v1027
        %v1030 = vmax.f32 %v1029, 0.0
        %v1032 = vlaneseq
        %v1033 = vshrl.u32 %v1032, 7
        %v1034 = vsub.s32 0, %v1033
        %v1035 = vrot.slane %v1022, %v1034
        %v1037 = vmul.f32 %v1030, %v1035
        %vm1038 = vcmask 814080
        %1039 = vst.msk [vmem:[%s446] sm:$0xf] %vm1038, 0
        %vm1040 = vcmask 818176
        %1041 = vst.msk [vmem:[%s453] sm:$0xff] %vm1040, 0.0
        %v1042 = vpack.c.bf16 %v1037, %v1037
        %v1044 = vunpack.c.l.b16 %v1042
        %v1045 = vpack.c.b16 %v1044, %v1044
        %1046 = vrot.lane.b32.xlu0 %v1045, 11
        %v1047 = vpop.permute.xlu0 %1046
        %vm1049 = vcmask 724056
        %1050 = vst.msk [vmem:[%s446] sm:$0xf] %vm1049, %v1047
        %v1051 = vmul.f32 %v1017, %v1035
        %1053 = vrot.lane.b32.xlu0 %v1051, 11
        %v1054 = vpop.permute.xlu0 %1053
        %vm1056 = vcmask 728152
        %1057 = vst.msk [vmem:[%s453] sm:$0xff] %vm1056, %v1054
        %s1058 = sand.u32 %s215, 1
        %s1059 = scalar_lea.sflag [#allocation4], %s1058
        %s1060 = sand.u32 %s215, 1
        %s1061 = smul.addr %s1060, 4
        %s1062 = scalar_lea.vmem [#allocation16], %s1061
        %s1063 = sand.u32 %s241, 1
        %s1064 = scalar_lea.sflag [#allocation18], %s1063
        %s1065 = sand.u32 %s241, 1
        %s1066 = smul.addr %s1065, 8
        %s1067 = scalar_lea.vmem [#allocation17], %s1066
        // Predicated region
        $region85: #{tpu_custom_call.1} parent=51 // pred_check
          %p1068 = pneg %p225
        $region86: #{tpu_custom_call.1} parent=51 // pred_check_branch
          %1070 = sbr.rel (%p1068) target = $region88
        $region87: #{tpu_custom_call.1} parent=51 // pred_region
          %s1072 = ssub.s32 64, 64
          %1073 = vsyncadd %s1059, %s1072
          %s1074 = smul.addr %s34, 64
          %s1075 = scalar_lea.hbm %s8, %s1074
          %s1077 = sshll.u32 %s1062, 4
          %s1078 = int_to_ptr.vmem [resolvable:$true] %s1077
          %1080 = dma.vmem_to_hbm [thread:$0]  %s1078, 64, %s1075, %s1059
        $region88: #{tpu_custom_call.1} parent=51 // pred_fallthru
          _
        // Predicated region
        $region89: #{tpu_custom_call.1} parent=51 // pred_check
          %p1081 = pneg %p251
        $region90: #{tpu_custom_call.1} parent=51 // pred_check_branch
          %1083 = sbr.rel (%p1081) target = $region92
        $region91: #{tpu_custom_call.1} parent=51 // pred_region
          %s1085 = ssub.s32 128, 128
          %1086 = vsyncadd %s1064, %s1085
          %s1087 = smul.addr %s34, 128
          %s1088 = scalar_lea.hbm %s9, %s1087
          %s1090 = sshll.u32 %s1067, 4
          %s1091 = int_to_ptr.vmem [resolvable:$true] %s1090
          %1093 = dma.vmem_to_hbm [thread:$0]  %s1091, 128, %s1088, %s1064
        $region92: #{tpu_custom_call.1} parent=51 // pred_fallthru
          _
      $region52: #{tpu_custom_call.1} parent=5 // pred_fallthru
        _
      %p1094 = scmp.le.s32.totalorder 2, %s29
      // Predicated region
      $region93: #{tpu_custom_call.1} parent=5 // pred_check
        %p1095 = pneg %p1094
      $region94: #{tpu_custom_call.1} parent=5 // pred_check_branch
        %1097 = sbr.rel (%p1095) target = $region96
      $region95: #{tpu_custom_call.1} parent=5 // pred_region
        %s1098 = ssub.s32 %s29, 2
        // Predicated region
        $region97: #{tpu_custom_call.1} parent=95 // pred_check
          %p1099 = pneg %p231
        $region98: #{tpu_custom_call.1} parent=95 // pred_check_branch
          %1101 = sbr.rel (%p1099) target = $region100
        $region99: #{tpu_custom_call.1} parent=95 // pred_region
          %s1102 = sand.u32 %s216, 1
          %s1103 = scalar_lea.sflag [#allocation4], %s1102
          %s1104 = sand.u32 %s216, 1
          %s1105 = smul.addr %s1104, 4
          %s1106 = scalar_lea.vmem [#allocation16], %s1105
          %1107 = dma.done %s1103, 64
        $region100: #{tpu_custom_call.1} parent=95 // pred_fallthru
          _
        // Predicated region
        $region101: #{tpu_custom_call.1} parent=95 // pred_check
          %p1108 = pneg %p257
        $region102: #{tpu_custom_call.1} parent=95 // pred_check_branch
          %1110 = sbr.rel (%p1108) target = $region104
        $region103: #{tpu_custom_call.1} parent=95 // pred_region
          %s1111 = sand.u32 %s242, 1
          %s1112 = scalar_lea.sflag [#allocation18], %s1111
          %s1113 = sand.u32 %s242, 1
          %s1114 = smul.addr %s1113, 8
          %s1115 = scalar_lea.vmem [#allocation17], %s1114
          %1116 = dma.done %s1112, 128
        $region104: #{tpu_custom_call.1} parent=95 // pred_fallthru
          _
      $region96: #{tpu_custom_call.1} parent=5 // pred_fallthru
        _
    $region6: #{tpu_custom_call.1} parent=1 // loop_footer
      %s33 = sadd.s32 1, %s29
    $region7: #{tpu_custom_call.1} parent=1 // loop_footer_branch
      %28 = sbr.rel target = $region3
    $region8: #{tpu_custom_call.1} parent=1 // loop_exit
      _
    %1117 = vsyncpa [#allocation3], 1
    %s1118 = scalar_lea.sflag [#allocation3], 1
    %1119 = vsyncpa %s1118, 1
    %1120 = vsyncpa [#allocation6], 1
    %1121 = vsyncpa [#allocation9], 1
    %1122 = vsyncpa [#allocation12], 1
    %1123 = vsyncpa [#allocation15], 1
    %1124 = vsyncpa [#allocation4], 1
    %s1125 = scalar_lea.sflag [#allocation4], 1
    %1126 = vsyncpa %s1125, 1
    %1127 = vsyncpa [#allocation18], 1
    %s1128 = scalar_lea.sflag [#allocation18], 1
    %1129 = vsyncpa %s1128, 1

</llo_original>
